<compile_context>
chip_gen: v5e
topology: v5e:2x2
jax: 0.10.0
libtpu: 0.0.40
codegen_flags: <defaults>
</compile_context>

<pallas_src>
import math
import functools

import jax
import jax.numpy as jnp
import numpy as np
from jax.experimental import pallas as pl
from jax.experimental.pallas import tpu as pltpu

_MIB = 1024 * 1024


# ---------------------------------------------------------------------------
# One MAB's multi-head attention + residual + fc_o/ReLU residual.
# ---------------------------------------------------------------------------
def _mab_core(Qp_bf, Kp_bf, Vp_bf, q_res_f32, wo_bf, bo_f32, num_heads):
    """Qp_bf/Kp_bf/Vp_bf: (Bt, Nq/Nk, D) bf16 projected Q/K/V (K pre-scaled by
    1/sqrt(D)).  q_res_f32: f32 residual, broadcastable to (Bt, Nq, D).
    wo_bf: (D, D) bf16.  bo_f32: (1, D) f32.  Returns (Bt, Nq, D) f32."""
    Bt, Nq, D = Qp_bf.shape
    dh = D // num_heads

    head_outs = []
    # Static per-head lane slices feed rank-3 batched einsums directly (no
    # split/merge concatenate copies); contraction is on the last dim so no
    # explicit K transpose hits the XLU before the MXU.
    for h in range(num_heads):
        sl = slice(h * dh, (h + 1) * dh)
        Qh, Kh, Vh = Qp_bf[:, :, sl], Kp_bf[:, :, sl], Vp_bf[:, :, sl]
        S = jnp.einsum("bqd,bkd->bqk", Qh, Kh,
                       preferred_element_type=jnp.float32)
        # Softmax chain stays in f32 (v5e VPU/EUP have no bf16 support).
        S = S - jnp.max(S, axis=-1, keepdims=True)
        P = jnp.exp(S)
        l = jnp.sum(P, axis=-1, keepdims=True)
        inv = pl.reciprocal(l, approx=True)          # EUP slot
        inv = inv * (2.0 - l * inv)                  # one Newton step -> ~exact
        PV = jnp.einsum("bqk,bkd->bqd", P.astype(jnp.bfloat16), Vh,
                        preferred_element_type=jnp.float32)
        head_outs.append(PV * inv)                   # fold 1/l into small P@V

    # Single lane-concat merge; residual add in f32 (broadcasts for shared Q).
    O = q_res_f32 + jnp.concatenate(head_outs, axis=-1)       # (Bt, Nq, D)

    # O = O + relu(fc_o(O)), flattened for one full-width MXU pass.
    O2 = O.reshape(Bt * Nq, D)
    OO = jnp.dot(O2.astype(jnp.bfloat16), wo_bf,
                 preferred_element_type=jnp.float32) + bo_f32
    return (O2 + jnp.maximum(OO, 0.0)).reshape(Bt, Nq, D)


# ---------------------------------------------------------------------------
# Fused ISAB kernel: one grid step handles Bt batch elements end-to-end.
# ---------------------------------------------------------------------------
def _isab_kernel(x_ref, i_ref,
                 wq0_ref, bq0_ref, wx_ref, bx_ref, wo0_ref, bo0_ref,
                 wh_ref, bh_ref, wo1_ref, bo1_ref,
                 o_ref, *, num_heads):
    Bt, N, dim_in = x_ref.shape
    _, num_inds, D = i_ref.shape
    f32, bf16 = jnp.float32, jnp.bfloat16

    x2 = x_ref[...].reshape(Bt * N, dim_in).astype(bf16)   # rows for projections
    I2 = i_ref[0].astype(bf16)                              # (num_inds, D), shared

    # ---- projections (bf16 MXU operands, f32 accumulate) -------------------
    # I -> Q0 (shared across the batch tile); X -> fused [K0 | V0 | Q1].
    Qp0 = jnp.dot(I2, wq0_ref[...], preferred_element_type=f32) + bq0_ref[...]
    xkvq = jnp.dot(x2, wx_ref[...], preferred_element_type=f32) + bx_ref[...]
    Kp0 = xkvq[:, 0 * D:1 * D].reshape(Bt, N, D)
    Vp0 = xkvq[:, 1 * D:2 * D].reshape(Bt, N, D)
    Qp1 = xkvq[:, 2 * D:3 * D].reshape(Bt, N, D)

    # ---- MAB0: H = MAB(I, X) -----------------------------------------------
    # Only the cheap bf16 score operand is broadcast across Bt; the f32
    # residual uses the un-broadcast (num_inds, D) projection.
    Qp0_b = jnp.broadcast_to(Qp0.astype(bf16)[None], (Bt, num_inds, D))
    H = _mab_core(Qp0_b, Kp0.astype(bf16), Vp0.astype(bf16), Qp0,
                  wo0_ref[...], bo0_ref[...], num_heads)     # (Bt, num_inds, D)

    # ---- MAB1: out = MAB(X, H) ----------------------------------------------
    h2 = H.reshape(Bt * num_inds, D).astype(bf16)
    kv1 = jnp.dot(h2, wh_ref[...], preferred_element_type=f32) + bh_ref[...]
    Kp1 = kv1[:, 0 * D:1 * D].reshape(Bt, num_inds, D)
    Vp1 = kv1[:, 1 * D:2 * D].reshape(Bt, num_inds, D)
    # TODO(synk): for very large N (esp. v7x 64 MiB VMEM), chunk this query
    # axis (fixed-size q chunks over Qp1/out) instead of holding all N rows.
    out = _mab_core(Qp1.astype(bf16), Kp1.astype(bf16), Vp1.astype(bf16), Qp1,
                    wo1_ref[...], bo1_ref[...], num_heads)   # (Bt, N, D)
    o_ref[...] = out.astype(o_ref.dtype)


# ---------------------------------------------------------------------------
# Tiling: VMEM-budget-derived, generation-aware batch tile.
# ---------------------------------------------------------------------------
def _vmem_budget_and_min_steps(B):
    """Return (VMEM budget bytes, minimum number of grid steps)."""
    try:
        cap = int(getattr(pltpu.get_tpu_info(), "vmem_capacity_bytes",
                          128 * _MIB))
    except Exception:                 # CPU trace / interpret / older runtimes
        cap = 64 * _MIB               # conservative fallback (fits v7x)
    budget = int(0.7 * cap)
    # v7x-like parts (64 MiB VMEM / TC, 2 TCs): keep >= 2 grid steps so the
    # "parallel" batch axis shards across both cores.  On v5e/v6e (128 MiB,
    # single TC) one bigger step is better.
    min_steps = 2 if (cap <= 64 * _MIB and B >= 2) else 1
    return budget, min_steps


def _estimate_step_vmem(Bt, N, num_inds, dim_in, dim_out, param_bytes):
    """Coarse per-grid-step VMEM estimate: double-buffered I/O tiles,
    double-buffered constant blocks, plus the dominant live intermediates of
    the fused two-MAB body.  ~1.5x safety margin for relayouts / spills."""
    f32, bf16 = 4, 2
    rows = Bt * N
    io = 2 * Bt * N * dim_in * f32 + 2 * Bt * N * dim_out * f32
    consts = 2 * param_bytes
    inter = (
        rows * dim_in * (f32 + bf16)                      # x tile + bf16 cast
        + rows * 3 * dim_out * f32                        # fused x projection
        + rows * dim_out * (2 * f32 + 3 * bf16)           # Qp1, O1 f32; K0/V0/Q1 bf16
        + Bt * num_inds * dim_out * (3 * f32 + 3 * bf16)  # H, Kp1, Vp1 (+bf16)
        + Bt * num_inds * N * f32 * 3                     # per-head scores (S, P, slack)
        + rows * dim_out * f32 * 2                        # fc_o + output staging
    )
    return int(1.5 * (io + consts + inter))


def _choose_block_b(B, N, num_inds, dim_in, dim_out, param_bytes,
                    vmem_budget, min_steps, max_rows=4096):
    divisors = [d for d in range(B, 0, -1) if B % d == 0 and B // d >= min_steps]
    if not divisors:
        divisors = [1]
    fitting = [d for d in divisors
               if _estimate_step_vmem(d, N, num_inds, dim_in, dim_out,
                                      param_bytes) <= vmem_budget]
    for d in fitting:                 # largest VMEM-fitting tile under row cap
        if d * N <= max_rows:
            return d
    if fitting:
        return fitting[-1]
    return divisors[-1]


# ---------------------------------------------------------------------------
# Wrapper
# ---------------------------------------------------------------------------
def isab_forward(X, params, num_heads, block_b=None):
    """ISAB forward: X (B, N, dim_in) -> (B, N, dim_out), single fused kernel."""
    B, N, dim_in = X.shape
    I = params["I"]                                   # (1, num_inds, dim_out)
    num_inds, dim_out = I.shape[1], I.shape[2]
    assert dim_out % num_heads == 0
    p0, p1 = params["mab0"], params["mab1"]
    bf16, f32 = jnp.bfloat16, jnp.float32

    # Host-side (inside jit, done once per compiled call):
    #  - fold 1/sqrt(dim_V) into the K projections (weights AND biases),
    #  - fuse projections that share an input,
    #  - pre-cast MXU weight operands to bf16 (biases stay f32).
    scale = 1.0 / math.sqrt(dim_out)
    wq0 = p0["wq"].astype(bf16)
    bq0 = p0["bq"].astype(f32)
    wx = jnp.concatenate([p0["wk"] * scale, p0["wv"], p1["wq"]], axis=1).astype(bf16)
    bx = jnp.concatenate([p0["bk"] * scale, p0["bv"], p1["bq"]], axis=1).astype(f32)
    wo0 = p0["wo"].astype(bf16)
    bo0 = p0["bo"].astype(f32)
    wh = jnp.concatenate([p1["wk"] * scale, p1["wv"]], axis=1).astype(bf16)
    bh = jnp.concatenate([p1["bk"] * scale, p1["bv"]], axis=1).astype(f32)
    wo1 = p1["wo"].astype(bf16)
    bo1 = p1["bo"].astype(f32)
    consts = (wq0, bq0, wx, bx, wo0, bo0, wh, bh, wo1, bo1)
    param_bytes = sum(int(np.prod(a.shape)) * a.dtype.itemsize for a in consts)
    param_bytes += int(np.prod(I.shape)) * I.dtype.itemsize

    vmem_budget, min_steps = _vmem_budget_and_min_steps(B)
    Bt = (_choose_block_b(B, N, num_inds, dim_in, dim_out, param_bytes,
                          vmem_budget, min_steps)
          if block_b is None else block_b)
    assert B % Bt == 0, (B, Bt)

    def const_spec(a):
        # TODO(synk): single-buffer these constant blocks
        # (pipeline_mode=pl.Buffered(1)) once that knob is reliably supported
        # by the grid-based pallas_call pipeline on all target generations.
        return pl.BlockSpec(a.shape, lambda b, _nd=a.ndim: (0,) * _nd)

    flops = int(
        2 * num_inds * dim_out * dim_out                  # I projection
        + 2 * B * N * dim_in * 3 * dim_out                # fused [K0|V0|Q1]
        + 2 * B * num_inds * dim_out * 2 * dim_out        # fused [K1|V1]
        + 8 * B * num_inds * N * dim_out                  # scores + P@V, both MABs
        + 2 * B * num_inds * dim_out * dim_out            # fc_o MAB0
        + 2 * B * N * dim_out * dim_out                   # fc_o MAB1
    )
    transcendentals = int(2 * B * num_heads * num_inds * N)
    bytes_accessed = int(B * N * (dim_in + dim_out) * 4 + param_bytes)

    kernel = functools.partial(_isab_kernel, num_heads=num_heads)
    # TODO(synk): if production dim_out is not a multiple of 128, pad the
    # output feature dim (and the MAB1 tail / wo1 / bo1 columns) to 128 here
    # and slice after the call so output stores stay lane-dense.
    return pl.pallas_call(
        kernel,
        out_shape=jax.ShapeDtypeStruct((B, N, dim_out), X.dtype),
        grid=(B // Bt,),
        in_specs=[
            pl.BlockSpec((Bt, N, dim_in), lambda b: (b, 0, 0)),
            # I un-broadcast: constant index_map keeps one copy VMEM-resident.
            pl.BlockSpec((1, num_inds, dim_out), lambda b: (0, 0, 0)),
        ] + [const_spec(a) for a in consts],
        out_specs=pl.BlockSpec((Bt, N, dim_out), lambda b: (b, 0, 0)),
        compiler_params=pltpu.CompilerParams(
            dimension_semantics=("parallel",),
            vmem_limit_bytes=vmem_budget),
        cost_estimate=pl.CostEstimate(flops=flops,
                                      transcendentals=transcendentals,
                                      bytes_accessed=bytes_accessed),
    )(X, I, *consts)


# ---------------------------------------------------------------------------
# Deterministic parameter init (mirrors nn.Linear / xavier_uniform shapes).
# ---------------------------------------------------------------------------
def _init_linear(key, fan_in, fan_out):
    kw, kb = jax.random.split(key)
    bound = 1.0 / math.sqrt(fan_in)
    w = jax.random.uniform(kw, (fan_in, fan_out), jnp.float32, -bound, bound)
    b = jax.random.uniform(kb, (1, fan_out), jnp.float32, -bound, bound)
    return w, b


def _init_mab(key, dim_Q, dim_K, dim_V):
    k0, k1, k2, k3 = jax.random.split(key, 4)
    wq, bq = _init_linear(k0, dim_Q, dim_V)
    wk, bk = _init_linear(k1, dim_K, dim_V)
    wv, bv = _init_linear(k2, dim_K, dim_V)
    wo, bo = _init_linear(k3, dim_V, dim_V)
    return dict(wq=wq, bq=bq, wk=wk, bk=bk, wv=wv, bv=bv, wo=wo, bo=bo)


def init_isab(key, dim_in, dim_out, num_inds):
    k_i, k0, k1 = jax.random.split(key, 3)
    bound = math.sqrt(6.0 / (num_inds + dim_out))   # xavier_uniform on (1, num_inds, dim_out)
    I = jax.random.uniform(k_i, (1, num_inds, dim_out), jnp.float32, -bound, bound)
    return dict(
        I=I,
        mab0=_init_mab(k0, dim_out, dim_in, dim_out),   # MAB(dim_out, dim_in, dim_out)
        mab1=_init_mab(k1, dim_in, dim_out, dim_out),   # MAB(dim_in, dim_out, dim_out)
    )


# ---------------------------------------------------------------------------
# Pure-JAX f32 reference (follows the torch split/cat head trick exactly).
# ---------------------------------------------------------------------------
def _mab_ref(Q, K, p, num_heads):
    Qp = Q @ p["wq"] + p["bq"][0]
    Kp = K @ p["wk"] + p["bk"][0]
    Vp = K @ p["wv"] + p["bv"][0]
    dim_V = Qp.shape[-1]
    Q_ = jnp.concatenate(jnp.split(Qp, num_heads, axis=2), axis=0)
    K_ = jnp.concatenate(jnp.split(Kp, num_heads, axis=2), axis=0)
    V_ = jnp.concatenate(jnp.split(Vp, num_heads, axis=2), axis=0)
    A = jax.nn.softmax(
        jnp.einsum("bqd,bkd->bqk", Q_, K_) / math.sqrt(dim_V), axis=-1)
    O = jnp.concatenate(
        jnp.split(Q_ + jnp.einsum("bqk,bkd->bqd", A, V_), num_heads, axis=0), axis=2)
    return O + jnp.maximum(O @ p["wo"] + p["bo"][0], 0.0)


def _isab_ref(X, params, num_heads):
    B = X.shape[0]
    I_rep = jnp.broadcast_to(params["I"], (B,) + params["I"].shape[1:])
    H = _mab_ref(I_rep, X, params["mab0"], num_heads)
    return _mab_ref(X, H, params["mab1"], num_heads)


# ---------------------------------------------------------------------------
if __name__ == "__main__":
    B, N = 2, 16
    dim_in, dim_out = 32, 32
    num_heads, num_inds = 4, 8

    key = jax.random.PRNGKey(0)
    k_param, k_x = jax.random.split(key)
    params = init_isab(k_param, dim_in, dim_out, num_inds)
    X = jax.random.normal(k_x, (B, N, dim_in), jnp.float32)

    fwd = jax.jit(lambda x, p: isab_forward(x, p, num_heads))
    out = jax.block_until_ready(fwd(X, params))

    ref = _isab_ref(X, params, num_heads)
    # Tolerance reflects bf16 MXU operands (f32 accumulation, f32 softmax);
    # the approx reciprocal is Newton-refined so it adds negligible error.
    np.testing.assert_allclose(np.asarray(out), np.asarray(ref),
                               rtol=3e-2, atol=3e-2)

    print("KERNEL_OK")
</pallas_src>

<mosaic_0001>
module attributes {stable_mosaic.version = 11 : i64} {
  func.func @_isab_kernel(%arg0: i32, %arg1: memref<1x16x32xf32, #tpu.memory_space<vmem>>, %arg2: memref<1x8x32xf32, #tpu.memory_space<vmem>>, %arg3: memref<32x32xbf16, #tpu.memory_space<vmem>>, %arg4: memref<1x32xf32, #tpu.memory_space<vmem>>, %arg5: memref<32x96xbf16, #tpu.memory_space<vmem>>, %arg6: memref<1x96xf32, #tpu.memory_space<vmem>>, %arg7: memref<32x32xbf16, #tpu.memory_space<vmem>>, %arg8: memref<1x32xf32, #tpu.memory_space<vmem>>, %arg9: memref<32x64xbf16, #tpu.memory_space<vmem>>, %arg10: memref<1x64xf32, #tpu.memory_space<vmem>>, %arg11: memref<32x32xbf16, #tpu.memory_space<vmem>>, %arg12: memref<1x32xf32, #tpu.memory_space<vmem>>, %arg13: memref<1x16x32xf32, #tpu.memory_space<vmem>>) attributes {dimension_semantics = [#tpu.dimension_semantics<parallel>], iteration_bounds = array<i64: 2>, scalar_prefetch = 0 : i64, scratch_operands = 0 : i64, tpu.core_type = #tpu.core_type<tc>, window_params = [{transform_indices = @transform_0, window_bounds = array<i64: 1, 16, 32>}, {pipeline_mode = #tpu.pipeline_mode<synchronous>, transform_indices = @transform_1, window_bounds = array<i64: 1, 8, 32>}, {pipeline_mode = #tpu.pipeline_mode<synchronous>, transform_indices = @transform_2, window_bounds = array<i64: 32, 32>}, {pipeline_mode = #tpu.pipeline_mode<synchronous>, transform_indices = @transform_3, window_bounds = array<i64: 1, 32>}, {pipeline_mode = #tpu.pipeline_mode<synchronous>, transform_indices = @transform_4, window_bounds = array<i64: 32, 96>}, {pipeline_mode = #tpu.pipeline_mode<synchronous>, transform_indices = @transform_5, window_bounds = array<i64: 1, 96>}, {pipeline_mode = #tpu.pipeline_mode<synchronous>, transform_indices = @transform_6, window_bounds = array<i64: 32, 32>}, {pipeline_mode = #tpu.pipeline_mode<synchronous>, transform_indices = @transform_7, window_bounds = array<i64: 1, 32>}, {pipeline_mode = #tpu.pipeline_mode<synchronous>, transform_indices = @transform_8, window_bounds = array<i64: 32, 64>}, {pipeline_mode = #tpu.pipeline_mode<synchronous>, transform_indices = @transform_9, window_bounds = array<i64: 1, 64>}, {pipeline_mode = #tpu.pipeline_mode<synchronous>, transform_indices = @transform_10, window_bounds = array<i64: 32, 32>}, {pipeline_mode = #tpu.pipeline_mode<synchronous>, transform_indices = @transform_11, window_bounds = array<i64: 1, 32>}, {transform_indices = @transform_12, window_bounds = array<i64: 1, 16, 32>}]} {
    %c0 = arith.constant 0 : index
    %c0_0 = arith.constant 0 : index
    %c0_1 = arith.constant 0 : index
    %0 = vector.load %arg1[%c0, %c0_0, %c0_1] : memref<1x16x32xf32, #tpu.memory_space<vmem>>, vector<1x16x32xf32>
    %1 = vector.shape_cast %0 : vector<1x16x32xf32> to vector<16x32xf32>
    %2 = arith.truncf %1 : vector<16x32xf32> to vector<16x32xbf16>
    %c0_2 = arith.constant 0 : index
    %c0_3 = arith.constant 0 : index
    %c0_4 = arith.constant 0 : index
    %3 = vector.load %arg2[%c0_2, %c0_3, %c0_4] : memref<1x8x32xf32, #tpu.memory_space<vmem>>, vector<1x8x32xf32>
    %4 = vector.shape_cast %3 : vector<1x8x32xf32> to vector<8x32xf32>
    %5 = arith.truncf %4 : vector<8x32xf32> to vector<8x32xbf16>
    %c0_5 = arith.constant 0 : index
    %c0_6 = arith.constant 0 : index
    %6 = vector.load %arg3[%c0_5, %c0_6] : memref<32x32xbf16, #tpu.memory_space<vmem>>, vector<32x32xbf16>
    %cst = arith.constant dense<0.000000e+00> : vector<8x32xf32>
    %7 = tpu.matmul %5, %6, %cst {dimension_numbers = #tpu.dot_dimension_numbers<[1], [0], [0], [1], [0, 0, 1, 1], [], []>} : vector<8x32xbf16>, vector<32x32xbf16>, vector<8x32xf32> -> vector<8x32xf32>
    %c0_7 = arith.constant 0 : index
    %c0_8 = arith.constant 0 : index
    %8 = vector.load %arg4[%c0_7, %c0_8] : memref<1x32xf32, #tpu.memory_space<vmem>>, vector<1x32xf32>
    %9 = vector.broadcast %8 : vector<1x32xf32> to vector<8x32xf32>
    %10 = arith.addf %7, %9 : vector<8x32xf32>
    %c0_9 = arith.constant 0 : index
    %c0_10 = arith.constant 0 : index
    %11 = vector.load %arg5[%c0_9, %c0_10] : memref<32x96xbf16, #tpu.memory_space<vmem>>, vector<32x96xbf16>
    %cst_11 = arith.constant dense<0.000000e+00> : vector<16x96xf32>
    %12 = tpu.matmul %2, %11, %cst_11 {dimension_numbers = #tpu.dot_dimension_numbers<[1], [0], [0], [1], [0, 0, 1, 1], [], []>} : vector<16x32xbf16>, vector<32x96xbf16>, vector<16x96xf32> -> vector<16x96xf32>
    %c0_12 = arith.constant 0 : index
    %c0_13 = arith.constant 0 : index
    %13 = vector.load %arg6[%c0_12, %c0_13] : memref<1x96xf32, #tpu.memory_space<vmem>>, vector<1x96xf32>
    %14 = vector.broadcast %13 : vector<1x96xf32> to vector<16x96xf32>
    %15 = arith.addf %12, %14 : vector<16x96xf32>
    %16 = vector.extract_strided_slice %15 {offsets = [0, 0], sizes = [16, 32], strides = [1, 1]} : vector<16x96xf32> to vector<16x32xf32>
    %17 = vector.shape_cast %16 : vector<16x32xf32> to vector<1x16x32xf32>
    %18 = vector.extract_strided_slice %15 {offsets = [0, 32], sizes = [16, 32], strides = [1, 1]} : vector<16x96xf32> to vector<16x32xf32>
    %19 = vector.shape_cast %18 : vector<16x32xf32> to vector<1x16x32xf32>
    %20 = vector.extract_strided_slice %15 {offsets = [0, 64], sizes = [16, 32], strides = [1, 1]} : vector<16x96xf32> to vector<16x32xf32>
    %21 = vector.shape_cast %20 : vector<16x32xf32> to vector<1x16x32xf32>
    %22 = arith.truncf %10 : vector<8x32xf32> to vector<8x32xbf16>
    %23 = vector.shape_cast %22 : vector<8x32xbf16> to vector<1x8x32xbf16>
    %24 = arith.truncf %17 : vector<1x16x32xf32> to vector<1x16x32xbf16>
    %25 = arith.truncf %19 : vector<1x16x32xf32> to vector<1x16x32xbf16>
    %c0_14 = arith.constant 0 : index
    %c0_15 = arith.constant 0 : index
    %26 = vector.load %arg7[%c0_14, %c0_15] : memref<32x32xbf16, #tpu.memory_space<vmem>>, vector<32x32xbf16>
    %c0_16 = arith.constant 0 : index
    %c0_17 = arith.constant 0 : index
    %27 = vector.load %arg8[%c0_16, %c0_17] : memref<1x32xf32, #tpu.memory_space<vmem>>, vector<1x32xf32>
    %28 = vector.extract_strided_slice %23 {offsets = [0, 0, 0], sizes = [1, 8, 8], strides = [1, 1, 1]} : vector<1x8x32xbf16> to vector<1x8x8xbf16>
    %29 = vector.extract_strided_slice %24 {offsets = [0, 0, 0], sizes = [1, 16, 8], strides = [1, 1, 1]} : vector<1x16x32xbf16> to vector<1x16x8xbf16>
    %30 = vector.extract_strided_slice %25 {offsets = [0, 0, 0], sizes = [1, 16, 8], strides = [1, 1, 1]} : vector<1x16x32xbf16> to vector<1x16x8xbf16>
    "tpu.trace_start"() <{level = 10 : i32, message = "bqd,bkd->bqk"}> : () -> ()
    %cst_18 = arith.constant dense<0.000000e+00> : vector<1x8x16xf32>
    %31 = tpu.matmul %28, %29, %cst_18 {dimension_numbers = #tpu.dot_dimension_numbers<[2], [2], [1], [1], [0, 0, 0, 1, 1, 1], [0], [0]>} : vector<1x8x8xbf16>, vector<1x16x8xbf16>, vector<1x8x16xf32> -> vector<1x8x16xf32>
    "tpu.trace_stop"() : () -> ()
    %cst_19 = arith.constant dense<0xFF800000> : vector<1x8xf32>
    %32 = vector.multi_reduction <maximumf>, %31, %cst_19 [2] : vector<1x8x16xf32> to vector<1x8xf32>
    %33 = vector.shape_cast %32 : vector<1x8xf32> to vector<1x8x1xf32>
    %34 = vector.broadcast %33 : vector<1x8x1xf32> to vector<1x8x16xf32>
    %35 = arith.subf %31, %34 : vector<1x8x16xf32>
    %36 = math.exp %35 : vector<1x8x16xf32>
    %cst_20 = arith.constant dense<0.000000e+00> : vector<1x8xf32>
    %37 = vector.multi_reduction <add>, %36, %cst_20 [2] : vector<1x8x16xf32> to vector<1x8xf32>
    %38 = vector.shape_cast %37 : vector<1x8xf32> to vector<1x8x1xf32>
    %39 = tpu.reciprocal %38 {approx = true} : vector<1x8x1xf32> -> vector<1x8x1xf32>
    %40 = arith.mulf %38, %39 : vector<1x8x1xf32>
    %cst_21 = arith.constant 2.000000e+00 : f32
    %41 = vector.broadcast %cst_21 : f32 to vector<1x8x1xf32>
    %42 = arith.subf %41, %40 : vector<1x8x1xf32>
    %43 = arith.mulf %39, %42 : vector<1x8x1xf32>
    %44 = arith.truncf %36 : vector<1x8x16xf32> to vector<1x8x16xbf16>
    "tpu.trace_start"() <{level = 10 : i32, message = "bqk,bkd->bqd"}> : () -> ()
    %cst_22 = arith.constant dense<0.000000e+00> : vector<1x8x8xf32>
    %45 = tpu.matmul %44, %30, %cst_22 {dimension_numbers = #tpu.dot_dimension_numbers<[2], [1], [1], [2], [0, 0, 0, 1, 1, 2], [0], [0]>} : vector<1x8x16xbf16>, vector<1x16x8xbf16>, vector<1x8x8xf32> -> vector<1x8x8xf32>
    "tpu.trace_stop"() : () -> ()
    %46 = vector.broadcast %43 : vector<1x8x1xf32> to vector<1x8x8xf32>
    %47 = arith.mulf %45, %46 : vector<1x8x8xf32>
    %48 = vector.extract_strided_slice %23 {offsets = [0, 0, 8], sizes = [1, 8, 8], strides = [1, 1, 1]} : vector<1x8x32xbf16> to vector<1x8x8xbf16>
    %49 = vector.extract_strided_slice %24 {offsets = [0, 0, 8], sizes = [1, 16, 8], strides = [1, 1, 1]} : vector<1x16x32xbf16> to vector<1x16x8xbf16>
    %50 = vector.extract_strided_slice %25 {offsets = [0, 0, 8], sizes = [1, 16, 8], strides = [1, 1, 1]} : vector<1x16x32xbf16> to vector<1x16x8xbf16>
    "tpu.trace_start"() <{level = 10 : i32, message = "bqd,bkd->bqk"}> : () -> ()
    %cst_23 = arith.constant dense<0.000000e+00> : vector<1x8x16xf32>
    %51 = tpu.matmul %48, %49, %cst_23 {dimension_numbers = #tpu.dot_dimension_numbers<[2], [2], [1], [1], [0, 0, 0, 1, 1, 1], [0], [0]>} : vector<1x8x8xbf16>, vector<1x16x8xbf16>, vector<1x8x16xf32> -> vector<1x8x16xf32>
    "tpu.trace_stop"() : () -> ()
    %cst_24 = arith.constant dense<0xFF800000> : vector<1x8xf32>
    %52 = vector.multi_reduction <maximumf>, %51, %cst_24 [2] : vector<1x8x16xf32> to vector<1x8xf32>
    %53 = vector.shape_cast %52 : vector<1x8xf32> to vector<1x8x1xf32>
    %54 = vector.broadcast %53 : vector<1x8x1xf32> to vector<1x8x16xf32>
    %55 = arith.subf %51, %54 : vector<1x8x16xf32>
    %56 = math.exp %55 : vector<1x8x16xf32>
    %cst_25 = arith.constant dense<0.000000e+00> : vector<1x8xf32>
    %57 = vector.multi_reduction <add>, %56, %cst_25 [2] : vector<1x8x16xf32> to vector<1x8xf32>
    %58 = vector.shape_cast %57 : vector<1x8xf32> to vector<1x8x1xf32>
    %59 = tpu.reciprocal %58 {approx = true} : vector<1x8x1xf32> -> vector<1x8x1xf32>
    %60 = arith.mulf %58, %59 : vector<1x8x1xf32>
    %cst_26 = arith.constant 2.000000e+00 : f32
    %61 = vector.broadcast %cst_26 : f32 to vector<1x8x1xf32>
    %62 = arith.subf %61, %60 : vector<1x8x1xf32>
    %63 = arith.mulf %59, %62 : vector<1x8x1xf32>
    %64 = arith.truncf %56 : vector<1x8x16xf32> to vector<1x8x16xbf16>
    "tpu.trace_start"() <{level = 10 : i32, message = "bqk,bkd->bqd"}> : () -> ()
    %cst_27 = arith.constant dense<0.000000e+00> : vector<1x8x8xf32>
    %65 = tpu.matmul %64, %50, %cst_27 {dimension_numbers = #tpu.dot_dimension_numbers<[2], [1], [1], [2], [0, 0, 0, 1, 1, 2], [0], [0]>} : vector<1x8x16xbf16>, vector<1x16x8xbf16>, vector<1x8x8xf32> -> vector<1x8x8xf32>
    "tpu.trace_stop"() : () -> ()
    %66 = vector.broadcast %63 : vector<1x8x1xf32> to vector<1x8x8xf32>
    %67 = arith.mulf %65, %66 : vector<1x8x8xf32>
    %68 = vector.extract_strided_slice %23 {offsets = [0, 0, 16], sizes = [1, 8, 8], strides = [1, 1, 1]} : vector<1x8x32xbf16> to vector<1x8x8xbf16>
    %69 = vector.extract_strided_slice %24 {offsets = [0, 0, 16], sizes = [1, 16, 8], strides = [1, 1, 1]} : vector<1x16x32xbf16> to vector<1x16x8xbf16>
    %70 = vector.extract_strided_slice %25 {offsets = [0, 0, 16], sizes = [1, 16, 8], strides = [1, 1, 1]} : vector<1x16x32xbf16> to vector<1x16x8xbf16>
    "tpu.trace_start"() <{level = 10 : i32, message = "bqd,bkd->bqk"}> : () -> ()
    %cst_28 = arith.constant dense<0.000000e+00> : vector<1x8x16xf32>
    %71 = tpu.matmul %68, %69, %cst_28 {dimension_numbers = #tpu.dot_dimension_numbers<[2], [2], [1], [1], [0, 0, 0, 1, 1, 1], [0], [0]>} : vector<1x8x8xbf16>, vector<1x16x8xbf16>, vector<1x8x16xf32> -> vector<1x8x16xf32>
    "tpu.trace_stop"() : () -> ()
    %cst_29 = arith.constant dense<0xFF800000> : vector<1x8xf32>
    %72 = vector.multi_reduction <maximumf>, %71, %cst_29 [2] : vector<1x8x16xf32> to vector<1x8xf32>
    %73 = vector.shape_cast %72 : vector<1x8xf32> to vector<1x8x1xf32>
    %74 = vector.broadcast %73 : vector<1x8x1xf32> to vector<1x8x16xf32>
    %75 = arith.subf %71, %74 : vector<1x8x16xf32>
    %76 = math.exp %75 : vector<1x8x16xf32>
    %cst_30 = arith.constant dense<0.000000e+00> : vector<1x8xf32>
    %77 = vector.multi_reduction <add>, %76, %cst_30 [2] : vector<1x8x16xf32> to vector<1x8xf32>
    %78 = vector.shape_cast %77 : vector<1x8xf32> to vector<1x8x1xf32>
    %79 = tpu.reciprocal %78 {approx = true} : vector<1x8x1xf32> -> vector<1x8x1xf32>
    %80 = arith.mulf %78, %79 : vector<1x8x1xf32>
    %cst_31 = arith.constant 2.000000e+00 : f32
    %81 = vector.broadcast %cst_31 : f32 to vector<1x8x1xf32>
    %82 = arith.subf %81, %80 : vector<1x8x1xf32>
    %83 = arith.mulf %79, %82 : vector<1x8x1xf32>
    %84 = arith.truncf %76 : vector<1x8x16xf32> to vector<1x8x16xbf16>
    "tpu.trace_start"() <{level = 10 : i32, message = "bqk,bkd->bqd"}> : () -> ()
    %cst_32 = arith.constant dense<0.000000e+00> : vector<1x8x8xf32>
    %85 = tpu.matmul %84, %70, %cst_32 {dimension_numbers = #tpu.dot_dimension_numbers<[2], [1], [1], [2], [0, 0, 0, 1, 1, 2], [0], [0]>} : vector<1x8x16xbf16>, vector<1x16x8xbf16>, vector<1x8x8xf32> -> vector<1x8x8xf32>
    "tpu.trace_stop"() : () -> ()
    %86 = vector.broadcast %83 : vector<1x8x1xf32> to vector<1x8x8xf32>
    %87 = arith.mulf %85, %86 : vector<1x8x8xf32>
    %88 = vector.extract_strided_slice %23 {offsets = [0, 0, 24], sizes = [1, 8, 8], strides = [1, 1, 1]} : vector<1x8x32xbf16> to vector<1x8x8xbf16>
    %89 = vector.extract_strided_slice %24 {offsets = [0, 0, 24], sizes = [1, 16, 8], strides = [1, 1, 1]} : vector<1x16x32xbf16> to vector<1x16x8xbf16>
    %90 = vector.extract_strided_slice %25 {offsets = [0, 0, 24], sizes = [1, 16, 8], strides = [1, 1, 1]} : vector<1x16x32xbf16> to vector<1x16x8xbf16>
    "tpu.trace_start"() <{level = 10 : i32, message = "bqd,bkd->bqk"}> : () -> ()
    %cst_33 = arith.constant dense<0.000000e+00> : vector<1x8x16xf32>
    %91 = tpu.matmul %88, %89, %cst_33 {dimension_numbers = #tpu.dot_dimension_numbers<[2], [2], [1], [1], [0, 0, 0, 1, 1, 1], [0], [0]>} : vector<1x8x8xbf16>, vector<1x16x8xbf16>, vector<1x8x16xf32> -> vector<1x8x16xf32>
    "tpu.trace_stop"() : () -> ()
    %cst_34 = arith.constant dense<0xFF800000> : vector<1x8xf32>
    %92 = vector.multi_reduction <maximumf>, %91, %cst_34 [2] : vector<1x8x16xf32> to vector<1x8xf32>
    %93 = vector.shape_cast %92 : vector<1x8xf32> to vector<1x8x1xf32>
    %94 = vector.broadcast %93 : vector<1x8x1xf32> to vector<1x8x16xf32>
    %95 = arith.subf %91, %94 : vector<1x8x16xf32>
    %96 = math.exp %95 : vector<1x8x16xf32>
    %cst_35 = arith.constant dense<0.000000e+00> : vector<1x8xf32>
    %97 = vector.multi_reduction <add>, %96, %cst_35 [2] : vector<1x8x16xf32> to vector<1x8xf32>
    %98 = vector.shape_cast %97 : vector<1x8xf32> to vector<1x8x1xf32>
    %99 = tpu.reciprocal %98 {approx = true} : vector<1x8x1xf32> -> vector<1x8x1xf32>
    %100 = arith.mulf %98, %99 : vector<1x8x1xf32>
    %cst_36 = arith.constant 2.000000e+00 : f32
    %101 = vector.broadcast %cst_36 : f32 to vector<1x8x1xf32>
    %102 = arith.subf %101, %100 : vector<1x8x1xf32>
    %103 = arith.mulf %99, %102 : vector<1x8x1xf32>
    %104 = arith.truncf %96 : vector<1x8x16xf32> to vector<1x8x16xbf16>
    "tpu.trace_start"() <{level = 10 : i32, message = "bqk,bkd->bqd"}> : () -> ()
    %cst_37 = arith.constant dense<0.000000e+00> : vector<1x8x8xf32>
    %105 = tpu.matmul %104, %90, %cst_37 {dimension_numbers = #tpu.dot_dimension_numbers<[2], [1], [1], [2], [0, 0, 0, 1, 1, 2], [0], [0]>} : vector<1x8x16xbf16>, vector<1x16x8xbf16>, vector<1x8x8xf32> -> vector<1x8x8xf32>
    "tpu.trace_stop"() : () -> ()
    %106 = vector.broadcast %103 : vector<1x8x1xf32> to vector<1x8x8xf32>
    %107 = arith.mulf %105, %106 : vector<1x8x8xf32>
    %108 = tpu.concatenate %47, %67, %87, %107 in 2 : vector<1x8x8xf32>, vector<1x8x8xf32>, vector<1x8x8xf32>, vector<1x8x8xf32> -> vector<1x8x32xf32>
    %109 = vector.shape_cast %10 : vector<8x32xf32> to vector<1x8x32xf32>
    %110 = arith.addf %109, %108 : vector<1x8x32xf32>
    %111 = vector.shape_cast %110 : vector<1x8x32xf32> to vector<8x32xf32>
    %112 = arith.truncf %111 : vector<8x32xf32> to vector<8x32xbf16>
    %cst_38 = arith.constant dense<0.000000e+00> : vector<8x32xf32>
    %113 = tpu.matmul %112, %26, %cst_38 {dimension_numbers = #tpu.dot_dimension_numbers<[1], [0], [0], [1], [0, 0, 1, 1], [], []>} : vector<8x32xbf16>, vector<32x32xbf16>, vector<8x32xf32> -> vector<8x32xf32>
    %114 = vector.broadcast %27 : vector<1x32xf32> to vector<8x32xf32>
    %115 = arith.addf %113, %114 : vector<8x32xf32>
    %cst_39 = arith.constant 0.000000e+00 : f32
    %116 = vector.broadcast %cst_39 : f32 to vector<8x32xf32>
    %117 = arith.maximumf %115, %116 : vector<8x32xf32>
    %118 = arith.addf %111, %117 : vector<8x32xf32>
    %119 = vector.shape_cast %118 : vector<8x32xf32> to vector<1x8x32xf32>
    %120 = vector.shape_cast %119 : vector<1x8x32xf32> to vector<8x32xf32>
    %121 = arith.truncf %120 : vector<8x32xf32> to vector<8x32xbf16>
    %c0_40 = arith.constant 0 : index
    %c0_41 = arith.constant 0 : index
    %122 = vector.load %arg9[%c0_40, %c0_41] : memref<32x64xbf16, #tpu.memory_space<vmem>>, vector<32x64xbf16>
    %cst_42 = arith.constant dense<0.000000e+00> : vector<8x64xf32>
    %123 = tpu.matmul %121, %122, %cst_42 {dimension_numbers = #tpu.dot_dimension_numbers<[1], [0], [0], [1], [0, 0, 1, 1], [], []>} : vector<8x32xbf16>, vector<32x64xbf16>, vector<8x64xf32> -> vector<8x64xf32>
    %c0_43 = arith.constant 0 : index
    %c0_44 = arith.constant 0 : index
    %124 = vector.load %arg10[%c0_43, %c0_44] : memref<1x64xf32, #tpu.memory_space<vmem>>, vector<1x64xf32>
    %125 = vector.broadcast %124 : vector<1x64xf32> to vector<8x64xf32>
    %126 = arith.addf %123, %125 : vector<8x64xf32>
    %127 = vector.extract_strided_slice %126 {offsets = [0, 0], sizes = [8, 32], strides = [1, 1]} : vector<8x64xf32> to vector<8x32xf32>
    %128 = vector.shape_cast %127 : vector<8x32xf32> to vector<1x8x32xf32>
    %129 = vector.extract_strided_slice %126 {offsets = [0, 32], sizes = [8, 32], strides = [1, 1]} : vector<8x64xf32> to vector<8x32xf32>
    %130 = vector.shape_cast %129 : vector<8x32xf32> to vector<1x8x32xf32>
    %131 = arith.truncf %21 : vector<1x16x32xf32> to vector<1x16x32xbf16>
    %132 = arith.truncf %128 : vector<1x8x32xf32> to vector<1x8x32xbf16>
    %133 = arith.truncf %130 : vector<1x8x32xf32> to vector<1x8x32xbf16>
    %c0_45 = arith.constant 0 : index
    %c0_46 = arith.constant 0 : index
    %134 = vector.load %arg11[%c0_45, %c0_46] : memref<32x32xbf16, #tpu.memory_space<vmem>>, vector<32x32xbf16>
    %c0_47 = arith.constant 0 : index
    %c0_48 = arith.constant 0 : index
    %135 = vector.load %arg12[%c0_47, %c0_48] : memref<1x32xf32, #tpu.memory_space<vmem>>, vector<1x32xf32>
    %136 = vector.extract_strided_slice %131 {offsets = [0, 0, 0], sizes = [1, 16, 8], strides = [1, 1, 1]} : vector<1x16x32xbf16> to vector<1x16x8xbf16>
    %137 = vector.extract_strided_slice %132 {offsets = [0, 0, 0], sizes = [1, 8, 8], strides = [1, 1, 1]} : vector<1x8x32xbf16> to vector<1x8x8xbf16>
    %138 = vector.extract_strided_slice %133 {offsets = [0, 0, 0], sizes = [1, 8, 8], strides = [1, 1, 1]} : vector<1x8x32xbf16> to vector<1x8x8xbf16>
    "tpu.trace_start"() <{level = 10 : i32, message = "bqd,bkd->bqk"}> : () -> ()
    %cst_49 = arith.constant dense<0.000000e+00> : vector<1x16x8xf32>
    %139 = tpu.matmul %136, %137, %cst_49 {dimension_numbers = #tpu.dot_dimension_numbers<[2], [2], [1], [1], [0, 0, 0, 1, 1, 1], [0], [0]>} : vector<1x16x8xbf16>, vector<1x8x8xbf16>, vector<1x16x8xf32> -> vector<1x16x8xf32>
    "tpu.trace_stop"() : () -> ()
    %cst_50 = arith.constant dense<0xFF800000> : vector<1x16xf32>
    %140 = vector.multi_reduction <maximumf>, %139, %cst_50 [2] : vector<1x16x8xf32> to vector<1x16xf32>
    %141 = vector.shape_cast %140 : vector<1x16xf32> to vector<1x16x1xf32>
    %142 = vector.broadcast %141 : vector<1x16x1xf32> to vector<1x16x8xf32>
    %143 = arith.subf %139, %142 : vector<1x16x8xf32>
    %144 = math.exp %143 : vector<1x16x8xf32>
    %cst_51 = arith.constant dense<0.000000e+00> : vector<1x16xf32>
    %145 = vector.multi_reduction <add>, %144, %cst_51 [2] : vector<1x16x8xf32> to vector<1x16xf32>
    %146 = vector.shape_cast %145 : vector<1x16xf32> to vector<1x16x1xf32>
    %147 = tpu.reciprocal %146 {approx = true} : vector<1x16x1xf32> -> vector<1x16x1xf32>
    %148 = arith.mulf %146, %147 : vector<1x16x1xf32>
    %cst_52 = arith.constant 2.000000e+00 : f32
    %149 = vector.broadcast %cst_52 : f32 to vector<1x16x1xf32>
    %150 = arith.subf %149, %148 : vector<1x16x1xf32>
    %151 = arith.mulf %147, %150 : vector<1x16x1xf32>
    %152 = arith.truncf %144 : vector<1x16x8xf32> to vector<1x16x8xbf16>
    "tpu.trace_start"() <{level = 10 : i32, message = "bqk,bkd->bqd"}> : () -> ()
    %cst_53 = arith.constant dense<0.000000e+00> : vector<1x16x8xf32>
    %153 = tpu.matmul %152, %138, %cst_53 {dimension_numbers = #tpu.dot_dimension_numbers<[2], [1], [1], [2], [0, 0, 0, 1, 1, 2], [0], [0]>} : vector<1x16x8xbf16>, vector<1x8x8xbf16>, vector<1x16x8xf32> -> vector<1x16x8xf32>
    "tpu.trace_stop"() : () -> ()
    %154 = vector.broadcast %151 : vector<1x16x1xf32> to vector<1x16x8xf32>
    %155 = arith.mulf %153, %154 : vector<1x16x8xf32>
    %156 = vector.extract_strided_slice %131 {offsets = [0, 0, 8], sizes = [1, 16, 8], strides = [1, 1, 1]} : vector<1x16x32xbf16> to vector<1x16x8xbf16>
    %157 = vector.extract_strided_slice %132 {offsets = [0, 0, 8], sizes = [1, 8, 8], strides = [1, 1, 1]} : vector<1x8x32xbf16> to vector<1x8x8xbf16>
    %158 = vector.extract_strided_slice %133 {offsets = [0, 0, 8], sizes = [1, 8, 8], strides = [1, 1, 1]} : vector<1x8x32xbf16> to vector<1x8x8xbf16>
    "tpu.trace_start"() <{level = 10 : i32, message = "bqd,bkd->bqk"}> : () -> ()
    %cst_54 = arith.constant dense<0.000000e+00> : vector<1x16x8xf32>
    %159 = tpu.matmul %156, %157, %cst_54 {dimension_numbers = #tpu.dot_dimension_numbers<[2], [2], [1], [1], [0, 0, 0, 1, 1, 1], [0], [0]>} : vector<1x16x8xbf16>, vector<1x8x8xbf16>, vector<1x16x8xf32> -> vector<1x16x8xf32>
    "tpu.trace_stop"() : () -> ()
    %cst_55 = arith.constant dense<0xFF800000> : vector<1x16xf32>
    %160 = vector.multi_reduction <maximumf>, %159, %cst_55 [2] : vector<1x16x8xf32> to vector<1x16xf32>
    %161 = vector.shape_cast %160 : vector<1x16xf32> to vector<1x16x1xf32>
    %162 = vector.broadcast %161 : vector<1x16x1xf32> to vector<1x16x8xf32>
    %163 = arith.subf %159, %162 : vector<1x16x8xf32>
    %164 = math.exp %163 : vector<1x16x8xf32>
    %cst_56 = arith.constant dense<0.000000e+00> : vector<1x16xf32>
    %165 = vector.multi_reduction <add>, %164, %cst_56 [2] : vector<1x16x8xf32> to vector<1x16xf32>
    %166 = vector.shape_cast %165 : vector<1x16xf32> to vector<1x16x1xf32>
    %167 = tpu.reciprocal %166 {approx = true} : vector<1x16x1xf32> -> vector<1x16x1xf32>
    %168 = arith.mulf %166, %167 : vector<1x16x1xf32>
    %cst_57 = arith.constant 2.000000e+00 : f32
    %169 = vector.broadcast %cst_57 : f32 to vector<1x16x1xf32>
    %170 = arith.subf %169, %168 : vector<1x16x1xf32>
    %171 = arith.mulf %167, %170 : vector<1x16x1xf32>
    %172 = arith.truncf %164 : vector<1x16x8xf32> to vector<1x16x8xbf16>
    "tpu.trace_start"() <{level = 10 : i32, message = "bqk,bkd->bqd"}> : () -> ()
    %cst_58 = arith.constant dense<0.000000e+00> : vector<1x16x8xf32>
    %173 = tpu.matmul %172, %158, %cst_58 {dimension_numbers = #tpu.dot_dimension_numbers<[2], [1], [1], [2], [0, 0, 0, 1, 1, 2], [0], [0]>} : vector<1x16x8xbf16>, vector<1x8x8xbf16>, vector<1x16x8xf32> -> vector<1x16x8xf32>
    "tpu.trace_stop"() : () -> ()
    %174 = vector.broadcast %171 : vector<1x16x1xf32> to vector<1x16x8xf32>
    %175 = arith.mulf %173, %174 : vector<1x16x8xf32>
    %176 = vector.extract_strided_slice %131 {offsets = [0, 0, 16], sizes = [1, 16, 8], strides = [1, 1, 1]} : vector<1x16x32xbf16> to vector<1x16x8xbf16>
    %177 = vector.extract_strided_slice %132 {offsets = [0, 0, 16], sizes = [1, 8, 8], strides = [1, 1, 1]} : vector<1x8x32xbf16> to vector<1x8x8xbf16>
    %178 = vector.extract_strided_slice %133 {offsets = [0, 0, 16], sizes = [1, 8, 8], strides = [1, 1, 1]} : vector<1x8x32xbf16> to vector<1x8x8xbf16>
    "tpu.trace_start"() <{level = 10 : i32, message = "bqd,bkd->bqk"}> : () -> ()
    %cst_59 = arith.constant dense<0.000000e+00> : vector<1x16x8xf32>
    %179 = tpu.matmul %176, %177, %cst_59 {dimension_numbers = #tpu.dot_dimension_numbers<[2], [2], [1], [1], [0, 0, 0, 1, 1, 1], [0], [0]>} : vector<1x16x8xbf16>, vector<1x8x8xbf16>, vector<1x16x8xf32> -> vector<1x16x8xf32>
    "tpu.trace_stop"() : () -> ()
    %cst_60 = arith.constant dense<0xFF800000> : vector<1x16xf32>
    %180 = vector.multi_reduction <maximumf>, %179, %cst_60 [2] : vector<1x16x8xf32> to vector<1x16xf32>
    %181 = vector.shape_cast %180 : vector<1x16xf32> to vector<1x16x1xf32>
    %182 = vector.broadcast %181 : vector<1x16x1xf32> to vector<1x16x8xf32>
    %183 = arith.subf %179, %182 : vector<1x16x8xf32>
    %184 = math.exp %183 : vector<1x16x8xf32>
    %cst_61 = arith.constant dense<0.000000e+00> : vector<1x16xf32>
    %185 = vector.multi_reduction <add>, %184, %cst_61 [2] : vector<1x16x8xf32> to vector<1x16xf32>
    %186 = vector.shape_cast %185 : vector<1x16xf32> to vector<1x16x1xf32>
    %187 = tpu.reciprocal %186 {approx = true} : vector<1x16x1xf32> -> vector<1x16x1xf32>
    %188 = arith.mulf %186, %187 : vector<1x16x1xf32>
    %cst_62 = arith.constant 2.000000e+00 : f32
    %189 = vector.broadcast %cst_62 : f32 to vector<1x16x1xf32>
    %190 = arith.subf %189, %188 : vector<1x16x1xf32>
    %191 = arith.mulf %187, %190 : vector<1x16x1xf32>
    %192 = arith.truncf %184 : vector<1x16x8xf32> to vector<1x16x8xbf16>
    "tpu.trace_start"() <{level = 10 : i32, message = "bqk,bkd->bqd"}> : () -> ()
    %cst_63 = arith.constant dense<0.000000e+00> : vector<1x16x8xf32>
    %193 = tpu.matmul %192, %178, %cst_63 {dimension_numbers = #tpu.dot_dimension_numbers<[2], [1], [1], [2], [0, 0, 0, 1, 1, 2], [0], [0]>} : vector<1x16x8xbf16>, vector<1x8x8xbf16>, vector<1x16x8xf32> -> vector<1x16x8xf32>
    "tpu.trace_stop"() : () -> ()
    %194 = vector.broadcast %191 : vector<1x16x1xf32> to vector<1x16x8xf32>
    %195 = arith.mulf %193, %194 : vector<1x16x8xf32>
    %196 = vector.extract_strided_slice %131 {offsets = [0, 0, 24], sizes = [1, 16, 8], strides = [1, 1, 1]} : vector<1x16x32xbf16> to vector<1x16x8xbf16>
    %197 = vector.extract_strided_slice %132 {offsets = [0, 0, 24], sizes = [1, 8, 8], strides = [1, 1, 1]} : vector<1x8x32xbf16> to vector<1x8x8xbf16>
    %198 = vector.extract_strided_slice %133 {offsets = [0, 0, 24], sizes = [1, 8, 8], strides = [1, 1, 1]} : vector<1x8x32xbf16> to vector<1x8x8xbf16>
    "tpu.trace_start"() <{level = 10 : i32, message = "bqd,bkd->bqk"}> : () -> ()
    %cst_64 = arith.constant dense<0.000000e+00> : vector<1x16x8xf32>
    %199 = tpu.matmul %196, %197, %cst_64 {dimension_numbers = #tpu.dot_dimension_numbers<[2], [2], [1], [1], [0, 0, 0, 1, 1, 1], [0], [0]>} : vector<1x16x8xbf16>, vector<1x8x8xbf16>, vector<1x16x8xf32> -> vector<1x16x8xf32>
    "tpu.trace_stop"() : () -> ()
    %cst_65 = arith.constant dense<0xFF800000> : vector<1x16xf32>
    %200 = vector.multi_reduction <maximumf>, %199, %cst_65 [2] : vector<1x16x8xf32> to vector<1x16xf32>
    %201 = vector.shape_cast %200 : vector<1x16xf32> to vector<1x16x1xf32>
    %202 = vector.broadcast %201 : vector<1x16x1xf32> to vector<1x16x8xf32>
    %203 = arith.subf %199, %202 : vector<1x16x8xf32>
    %204 = math.exp %203 : vector<1x16x8xf32>
    %cst_66 = arith.constant dense<0.000000e+00> : vector<1x16xf32>
    %205 = vector.multi_reduction <add>, %204, %cst_66 [2] : vector<1x16x8xf32> to vector<1x16xf32>
    %206 = vector.shape_cast %205 : vector<1x16xf32> to vector<1x16x1xf32>
    %207 = tpu.reciprocal %206 {approx = true} : vector<1x16x1xf32> -> vector<1x16x1xf32>
    %208 = arith.mulf %206, %207 : vector<1x16x1xf32>
    %cst_67 = arith.constant 2.000000e+00 : f32
    %209 = vector.broadcast %cst_67 : f32 to vector<1x16x1xf32>
    %210 = arith.subf %209, %208 : vector<1x16x1xf32>
    %211 = arith.mulf %207, %210 : vector<1x16x1xf32>
    %212 = arith.truncf %204 : vector<1x16x8xf32> to vector<1x16x8xbf16>
    "tpu.trace_start"() <{level = 10 : i32, message = "bqk,bkd->bqd"}> : () -> ()
    %cst_68 = arith.constant dense<0.000000e+00> : vector<1x16x8xf32>
    %213 = tpu.matmul %212, %198, %cst_68 {dimension_numbers = #tpu.dot_dimension_numbers<[2], [1], [1], [2], [0, 0, 0, 1, 1, 2], [0], [0]>} : vector<1x16x8xbf16>, vector<1x8x8xbf16>, vector<1x16x8xf32> -> vector<1x16x8xf32>
    "tpu.trace_stop"() : () -> ()
    %214 = vector.broadcast %211 : vector<1x16x1xf32> to vector<1x16x8xf32>
    %215 = arith.mulf %213, %214 : vector<1x16x8xf32>
    %216 = tpu.concatenate %155, %175, %195, %215 in 2 : vector<1x16x8xf32>, vector<1x16x8xf32>, vector<1x16x8xf32>, vector<1x16x8xf32> -> vector<1x16x32xf32>
    %217 = arith.addf %21, %216 : vector<1x16x32xf32>
    %218 = vector.shape_cast %217 : vector<1x16x32xf32> to vector<16x32xf32>
    %219 = arith.truncf %218 : vector<16x32xf32> to vector<16x32xbf16>
    %cst_69 = arith.constant dense<0.000000e+00> : vector<16x32xf32>
    %220 = tpu.matmul %219, %134, %cst_69 {dimension_numbers = #tpu.dot_dimension_numbers<[1], [0], [0], [1], [0, 0, 1, 1], [], []>} : vector<16x32xbf16>, vector<32x32xbf16>, vector<16x32xf32> -> vector<16x32xf32>
    %221 = vector.broadcast %135 : vector<1x32xf32> to vector<16x32xf32>
    %222 = arith.addf %220, %221 : vector<16x32xf32>
    %cst_70 = arith.constant 0.000000e+00 : f32
    %223 = vector.broadcast %cst_70 : f32 to vector<16x32xf32>
    %224 = arith.maximumf %222, %223 : vector<16x32xf32>
    %225 = arith.addf %218, %224 : vector<16x32xf32>
    %226 = vector.shape_cast %225 : vector<16x32xf32> to vector<1x16x32xf32>
    %c0_71 = arith.constant 0 : index
    %c0_72 = arith.constant 0 : index
    %c0_73 = arith.constant 0 : index
    %227 = vector.load %arg13[%c0_71, %c0_72, %c0_73] : memref<1x16x32xf32, #tpu.memory_space<vmem>>, vector<1x16x32xf32>
    tpu.vector_store %arg13[%c0_71, %c0_72, %c0_73], %226 {strides = array<i32>} : memref<1x16x32xf32, #tpu.memory_space<vmem>>, vector<1x16x32xf32>,
    return
  }
  func.func @transform_0(%arg0: i32) -> (i32, i32, i32) {
    %c0_i32 = arith.constant 0 : i32
    %c0_i32_0 = arith.constant 0 : i32
    %c0_i32_1 = arith.constant 0 : i32
    return %arg0, %c0_i32, %c0_i32_0 : i32, i32, i32
  }
  func.func @transform_1(%arg0: i32) -> (i32, i32, i32) {
    %c0_i32 = arith.constant 0 : i32
    %c0_i32_0 = arith.constant 0 : i32
    %c0_i32_1 = arith.constant 0 : i32
    %c0_i32_2 = arith.constant 0 : i32
    return %c0_i32, %c0_i32_0, %c0_i32_1 : i32, i32, i32
  }
  func.func @transform_2(%arg0: i32) -> (i32, i32) {
    %c0_i32 = arith.constant 0 : i32
    %c0_i32_0 = arith.constant 0 : i32
    %c0_i32_1 = arith.constant 0 : i32
    return %c0_i32, %c0_i32_0 : i32, i32
  }
  func.func @transform_3(%arg0: i32) -> (i32, i32) {
    %c0_i32 = arith.constant 0 : i32
    %c0_i32_0 = arith.constant 0 : i32
    %c0_i32_1 = arith.constant 0 : i32
    return %c0_i32, %c0_i32_0 : i32, i32
  }
  func.func @transform_4(%arg0: i32) -> (i32, i32) {
    %c0_i32 = arith.constant 0 : i32
    %c0_i32_0 = arith.constant 0 : i32
    %c0_i32_1 = arith.constant 0 : i32
    return %c0_i32, %c0_i32_0 : i32, i32
  }
  func.func @transform_5(%arg0: i32) -> (i32, i32) {
    %c0_i32 = arith.constant 0 : i32
    %c0_i32_0 = arith.constant 0 : i32
    %c0_i32_1 = arith.constant 0 : i32
    return %c0_i32, %c0_i32_0 : i32, i32
  }
  func.func @transform_6(%arg0: i32) -> (i32, i32) {
    %c0_i32 = arith.constant 0 : i32
    %c0_i32_0 = arith.constant 0 : i32
    %c0_i32_1 = arith.constant 0 : i32
    return %c0_i32, %c0_i32_0 : i32, i32
  }
  func.func @transform_7(%arg0: i32) -> (i32, i32) {
    %c0_i32 = arith.constant 0 : i32
    %c0_i32_0 = arith.constant 0 : i32
    %c0_i32_1 = arith.constant 0 : i32
    return %c0_i32, %c0_i32_0 : i32, i32
  }
  func.func @transform_8(%arg0: i32) -> (i32, i32) {
    %c0_i32 = arith.constant 0 : i32
    %c0_i32_0 = arith.constant 0 : i32
    %c0_i32_1 = arith.constant 0 : i32
    return %c0_i32, %c0_i32_0 : i32, i32
  }
  func.func @transform_9(%arg0: i32) -> (i32, i32) {
    %c0_i32 = arith.constant 0 : i32
    %c0_i32_0 = arith.constant 0 : i32
    %c0_i32_1 = arith.constant 0 : i32
    return %c0_i32, %c0_i32_0 : i32, i32
  }
  func.func @transform_10(%arg0: i32) -> (i32, i32) {
    %c0_i32 = arith.constant 0 : i32
    %c0_i32_0 = arith.constant 0 : i32
    %c0_i32_1 = arith.constant 0 : i32
    return %c0_i32, %c0_i32_0 : i32, i32
  }
  func.func @transform_11(%arg0: i32) -> (i32, i32) {
    %c0_i32 = arith.constant 0 : i32
    %c0_i32_0 = arith.constant 0 : i32
    %c0_i32_1 = arith.constant 0 : i32
    return %c0_i32, %c0_i32_0 : i32, i32
  }
  func.func @transform_12(%arg0: i32) -> (i32, i32, i32) {
    %c0_i32 = arith.constant 0 : i32
    %c0_i32_0 = arith.constant 0 : i32
    %c0_i32_1 = arith.constant 0 : i32
    return %arg0, %c0_i32, %c0_i32_0 : i32, i32, i32
  }
}

</mosaic_0001>

<llo_original>
// kernel: _lambda_.1
$region0: #{_lambda_.1}
  #allocation0 [shape = 'u32[]', space=smem, size = 0x4, offset = 0x4, fixed_abs, tag = 'smem constant byte address 0x4 - core index']
  #allocation1 [shape = 'u32[72,128]{1,0:T(1,128)}', space=vmem, size = 0x9000, scoped, tag = 'internal scratch']
  %s0 = inlined_call_operand.vmem [shape: f32[2,16,32], index: 0, kind: input, shape index: {}]
  %s1 = inlined_call_operand.vmem [shape: f32[1,8,32], index: 1, kind: input, shape index: {}]
  %s2 = inlined_call_operand.vmem [shape: bf16[32,32], index: 2, kind: input, shape index: {}]
  %s3 = inlined_call_operand.vmem [shape: f32[1,32], index: 3, kind: input, shape index: {}]
  %s4 = inlined_call_operand.vmem [shape: bf16[32,96], index: 4, kind: input, shape index: {}]
  %s5 = inlined_call_operand.vmem [shape: f32[1,96], index: 5, kind: input, shape index: {}]
  %s6 = inlined_call_operand.vmem [shape: bf16[32,32], index: 6, kind: input, shape index: {}]
  %s7 = inlined_call_operand.vmem [shape: f32[1,32], index: 7, kind: input, shape index: {}]
  %s8 = inlined_call_operand.vmem [shape: bf16[32,64], index: 8, kind: input, shape index: {}]
  %s9 = inlined_call_operand.vmem [shape: f32[1,64], index: 9, kind: input, shape index: {}]
  %s10 = inlined_call_operand.vmem [shape: bf16[32,32], index: 10, kind: input, shape index: {}]
  %s11 = inlined_call_operand.vmem [shape: f32[1,32], index: 11, kind: input, shape index: {}]
  %s12 = inlined_call_operand.hbm [shape: f32[2,16,32], index: 12, kind: output, shape index: {}]
  %s13 = sld [smem:[#allocation0]]
  $region81: #{_lambda_.1} parent=0
    _
  %s15 = ssub.s32 1, %s13
  %s16 = scalar_select 0, %s15, %s13
  $region1: #{_lambda_.1} parent=0
    #allocation2 [shape = 'u8[16384]{0}', space=vmem, size = 0x4000, scoped, tag = 'output window, operand 0']
    #allocation3 [shape = 's32[2]{0}', space=sflag, size = 0x8, scoped, tag = 'scoped memory for _lambda_.1']
    %17 = vsyncpa [#allocation3], 0
    %s18 = scalar_lea.sflag [#allocation3], 1
    %19 = vsyncpa %s18, 0
    loop: start=0, step=1, limit=4
    $region2: #{_lambda_.1} parent=1 // loop_pre_header
      _
    $region3: #{_lambda_.1} parent=1 // loop_header
      %s21 = sphi 0, %s25
      %p22 = scmp.ge.s32.totalorder %s21, 4
      %s31 = sphi 0, %s33
      %s34 = sphi 0, %s31
      %s35 = sphi 0, %s34
      %s51 = sphi 0, %s35
      %s55 = sphi 0, %s55
      %s57 = sphi 0, %s55
      %s58 = sphi 0, %s57
      %s72 = sphi 0, %s58
      %s76 = sphi 0, %s76
      %s78 = sphi 0, %s76
      %s79 = sphi 0, %s78
      %s93 = sphi 0, %s79
      %s97 = sphi 0, %s97
      %s99 = sphi 0, %s97
      %s100 = sphi 0, %s99
      %s114 = sphi 0, %s100
      %s118 = sphi 0, %s118
      %s120 = sphi 0, %s118
      %s121 = sphi 0, %s120
      %s135 = sphi 0, %s121
      %s139 = sphi 0, %s139
      %s141 = sphi 0, %s139
      %s142 = sphi 0, %s141
      %s156 = sphi 0, %s142
      %s160 = sphi 0, %s160
      %s162 = sphi 0, %s160
      %s163 = sphi 0, %s162
      %s177 = sphi 0, %s163
      %s181 = sphi 0, %s181
      %s183 = sphi 0, %s181
      %s184 = sphi 0, %s183
      %s198 = sphi 0, %s184
      %s202 = sphi 0, %s202
      %s204 = sphi 0, %s202
      %s205 = sphi 0, %s204
      %s219 = sphi 0, %s205
      %s223 = sphi 0, %s223
      %s225 = sphi 0, %s223
      %s226 = sphi 0, %s225
      %s240 = sphi 0, %s226
      %s244 = sphi 0, %s244
      %s246 = sphi 0, %s244
      %s247 = sphi 0, %s246
      %s261 = sphi 0, %s247
      %s265 = sphi 0, %s265
      %s267 = sphi 0, %s265
      %s268 = sphi 0, %s267
      %s282 = sphi 0, %s268
      %s288 = sphi 0, %s290
      %s291 = sphi 0, %s288
      %s292 = sphi 0, %s291
      %s308 = sphi 0, %s292
    $region4: #{_lambda_.1} parent=1 // loop_header_branch
      %24 = sbr.rel (%p22) target = $region8
    $region5: #{_lambda_.1} parent=1 // loop_body
      %s26 = ssub.s32 %s21, 1
      %s27 = ssub.s32 %s21, 2
      %s28 = sadd.s32 %s21, 1
      %s29 = ssub.s32 %s21, %s28
      %p30 = scmp.eq.s32.totalorder %s29, 0
      %s32 = sadd.s32 %s31, 1
      %s33 = scalar_select %p30, %s31, %s32
      %p36 = pneg %p30
      %p37 = scmp.eq.s32.totalorder %s21, 1
      %p38 = por %p36, %p37
      %p39 = scmp.ne.s32.totalorder %s31, %s34
      %p40 = scmp.eq.s32.totalorder %s21, 0
      %p41 = por %p39, %p40
      %p42 = scmp.ne.s32.totalorder %s31, %s34
      %p43 = scmp.eq.s32.totalorder %s26, 1
      %p44 = por %p42, %p43
      %p45 = scmp.ne.s32.totalorder %s34, %s35
      %p46 = scmp.eq.s32.totalorder %s26, 0
      %p47 = por %p45, %p46
      %p48 = scmp.ne.s32.totalorder %s34, %s35
      %p49 = scmp.eq.s32.totalorder %s27, 1
      %p50 = por %p48, %p49
      %p52 = scmp.ne.s32.totalorder %s35, %s51
      %p53 = scmp.eq.s32.totalorder %s27, 0
      %p54 = por %p52, %p53
      %s56 = sadd.s32 %s55, 1
      %p59 = scmp.eq.s32.totalorder %s21, 1
      %p60 = scmp.ne.s32.totalorder %s55, %s57
      %p61 = scmp.eq.s32.totalorder %s21, 0
      %p62 = por %p60, %p61
      %p63 = scmp.ne.s32.totalorder %s55, %s57
      %p64 = scmp.eq.s32.totalorder %s26, 1
      %p65 = por %p63, %p64
      %p66 = scmp.ne.s32.totalorder %s57, %s58
      %p67 = scmp.eq.s32.totalorder %s26, 0
      %p68 = por %p66, %p67
      %p69 = scmp.ne.s32.totalorder %s57, %s58
      %p70 = scmp.eq.s32.totalorder %s27, 1
      %p71 = por %p69, %p70
      %p73 = scmp.ne.s32.totalorder %s58, %s72
      %p74 = scmp.eq.s32.totalorder %s27, 0
      %p75 = por %p73, %p74
      %s77 = sadd.s32 %s76, 1
      %p80 = scmp.eq.s32.totalorder %s21, 1
      %p81 = scmp.ne.s32.totalorder %s76, %s78
      %p82 = scmp.eq.s32.totalorder %s21, 0
      %p83 = por %p81, %p82
      %p84 = scmp.ne.s32.totalorder %s76, %s78
      %p85 = scmp.eq.s32.totalorder %s26, 1
      %p86 = por %p84, %p85
      %p87 = scmp.ne.s32.totalorder %s78, %s79
      %p88 = scmp.eq.s32.totalorder %s26, 0
      %p89 = por %p87, %p88
      %p90 = scmp.ne.s32.totalorder %s78, %s79
      %p91 = scmp.eq.s32.totalorder %s27, 1
      %p92 = por %p90, %p91
      %p94 = scmp.ne.s32.totalorder %s79, %s93
      %p95 = scmp.eq.s32.totalorder %s27, 0
      %p96 = por %p94, %p95
      %s98 = sadd.s32 %s97, 1
      %p101 = scmp.eq.s32.totalorder %s21, 1
      %p102 = scmp.ne.s32.totalorder %s97, %s99
      %p103 = scmp.eq.s32.totalorder %s21, 0
      %p104 = por %p102, %p103
      %p105 = scmp.ne.s32.totalorder %s97, %s99
      %p106 = scmp.eq.s32.totalorder %s26, 1
      %p107 = por %p105, %p106
      %p108 = scmp.ne.s32.totalorder %s99, %s100
      %p109 = scmp.eq.s32.totalorder %s26, 0
      %p110 = por %p108, %p109
      %p111 = scmp.ne.s32.totalorder %s99, %s100
      %p112 = scmp.eq.s32.totalorder %s27, 1
      %p113 = por %p111, %p112
      %p115 = scmp.ne.s32.totalorder %s100, %s114
      %p116 = scmp.eq.s32.totalorder %s27, 0
      %p117 = por %p115, %p116
      %s119 = sadd.s32 %s118, 1
      %p122 = scmp.eq.s32.totalorder %s21, 1
      %p123 = scmp.ne.s32.totalorder %s118, %s120
      %p124 = scmp.eq.s32.totalorder %s21, 0
      %p125 = por %p123, %p124
      %p126 = scmp.ne.s32.totalorder %s118, %s120
      %p127 = scmp.eq.s32.totalorder %s26, 1
      %p128 = por %p126, %p127
      %p129 = scmp.ne.s32.totalorder %s120, %s121
      %p130 = scmp.eq.s32.totalorder %s26, 0
      %p131 = por %p129, %p130
      %p132 = scmp.ne.s32.totalorder %s120, %s121
      %p133 = scmp.eq.s32.totalorder %s27, 1
      %p134 = por %p132, %p133
      %p136 = scmp.ne.s32.totalorder %s121, %s135
      %p137 = scmp.eq.s32.totalorder %s27, 0
      %p138 = por %p136, %p137
      %s140 = sadd.s32 %s139, 1
      %p143 = scmp.eq.s32.totalorder %s21, 1
      %p144 = scmp.ne.s32.totalorder %s139, %s141
      %p145 = scmp.eq.s32.totalorder %s21, 0
      %p146 = por %p144, %p145
      %p147 = scmp.ne.s32.totalorder %s139, %s141
      %p148 = scmp.eq.s32.totalorder %s26, 1
      %p149 = por %p147, %p148
      %p150 = scmp.ne.s32.totalorder %s141, %s142
      %p151 = scmp.eq.s32.totalorder %s26, 0
      %p152 = por %p150, %p151
      %p153 = scmp.ne.s32.totalorder %s141, %s142
      %p154 = scmp.eq.s32.totalorder %s27, 1
      %p155 = por %p153, %p154
      %p157 = scmp.ne.s32.totalorder %s142, %s156
      %p158 = scmp.eq.s32.totalorder %s27, 0
      %p159 = por %p157, %p158
      %s161 = sadd.s32 %s160, 1
      %p164 = scmp.eq.s32.totalorder %s21, 1
      %p165 = scmp.ne.s32.totalorder %s160, %s162
      %p166 = scmp.eq.s32.totalorder %s21, 0
      %p167 = por %p165, %p166
      %p168 = scmp.ne.s32.totalorder %s160, %s162
      %p169 = scmp.eq.s32.totalorder %s26, 1
      %p170 = por %p168, %p169
      %p171 = scmp.ne.s32.totalorder %s162, %s163
      %p172 = scmp.eq.s32.totalorder %s26, 0
      %p173 = por %p171, %p172
      %p174 = scmp.ne.s32.totalorder %s162, %s163
      %p175 = scmp.eq.s32.totalorder %s27, 1
      %p176 = por %p174, %p175
      %p178 = scmp.ne.s32.totalorder %s163, %s177
      %p179 = scmp.eq.s32.totalorder %s27, 0
      %p180 = por %p178, %p179
      %s182 = sadd.s32 %s181, 1
      %p185 = scmp.eq.s32.totalorder %s21, 1
      %p186 = scmp.ne.s32.totalorder %s181, %s183
      %p187 = scmp.eq.s32.totalorder %s21, 0
      %p188 = por %p186, %p187
      %p189 = scmp.ne.s32.totalorder %s181, %s183
      %p190 = scmp.eq.s32.totalorder %s26, 1
      %p191 = por %p189, %p190
      %p192 = scmp.ne.s32.totalorder %s183, %s184
      %p193 = scmp.eq.s32.totalorder %s26, 0
      %p194 = por %p192, %p193
      %p195 = scmp.ne.s32.totalorder %s183, %s184
      %p196 = scmp.eq.s32.totalorder %s27, 1
      %p197 = por %p195, %p196
      %p199 = scmp.ne.s32.totalorder %s184, %s198
      %p200 = scmp.eq.s32.totalorder %s27, 0
      %p201 = por %p199, %p200
      %s203 = sadd.s32 %s202, 1
      %p206 = scmp.eq.s32.totalorder %s21, 1
      %p207 = scmp.ne.s32.totalorder %s202, %s204
      %p208 = scmp.eq.s32.totalorder %s21, 0
      %p209 = por %p207, %p208
      %p210 = scmp.ne.s32.totalorder %s202, %s204
      %p211 = scmp.eq.s32.totalorder %s26, 1
      %p212 = por %p210, %p211
      %p213 = scmp.ne.s32.totalorder %s204, %s205
      %p214 = scmp.eq.s32.totalorder %s26, 0
      %p215 = por %p213, %p214
      %p216 = scmp.ne.s32.totalorder %s204, %s205
      %p217 = scmp.eq.s32.totalorder %s27, 1
      %p218 = por %p216, %p217
      %p220 = scmp.ne.s32.totalorder %s205, %s219
      %p221 = scmp.eq.s32.totalorder %s27, 0
      %p222 = por %p220, %p221
      %s224 = sadd.s32 %s223, 1
      %p227 = scmp.eq.s32.totalorder %s21, 1
      %p228 = scmp.ne.s32.totalorder %s223, %s225
      %p229 = scmp.eq.s32.totalorder %s21, 0
      %p230 = por %p228, %p229
      %p231 = scmp.ne.s32.totalorder %s223, %s225
      %p232 = scmp.eq.s32.totalorder %s26, 1
      %p233 = por %p231, %p232
      %p234 = scmp.ne.s32.totalorder %s225, %s226
      %p235 = scmp.eq.s32.totalorder %s26, 0
      %p236 = por %p234, %p235
      %p237 = scmp.ne.s32.totalorder %s225, %s226
      %p238 = scmp.eq.s32.totalorder %s27, 1
      %p239 = por %p237, %p238
      %p241 = scmp.ne.s32.totalorder %s226, %s240
      %p242 = scmp.eq.s32.totalorder %s27, 0
      %p243 = por %p241, %p242
      %s245 = sadd.s32 %s244, 1
      %p248 = scmp.eq.s32.totalorder %s21, 1
      %p249 = scmp.ne.s32.totalorder %s244, %s246
      %p250 = scmp.eq.s32.totalorder %s21, 0
      %p251 = por %p249, %p250
      %p252 = scmp.ne.s32.totalorder %s244, %s246
      %p253 = scmp.eq.s32.totalorder %s26, 1
      %p254 = por %p252, %p253
      %p255 = scmp.ne.s32.totalorder %s246, %s247
      %p256 = scmp.eq.s32.totalorder %s26, 0
      %p257 = por %p255, %p256
      %p258 = scmp.ne.s32.totalorder %s246, %s247
      %p259 = scmp.eq.s32.totalorder %s27, 1
      %p260 = por %p258, %p259
      %p262 = scmp.ne.s32.totalorder %s247, %s261
      %p263 = scmp.eq.s32.totalorder %s27, 0
      %p264 = por %p262, %p263
      %s266 = sadd.s32 %s265, 1
      %p269 = scmp.eq.s32.totalorder %s21, 1
      %p270 = scmp.ne.s32.totalorder %s265, %s267
      %p271 = scmp.eq.s32.totalorder %s21, 0
      %p272 = por %p270, %p271
      %p273 = scmp.ne.s32.totalorder %s265, %s267
      %p274 = scmp.eq.s32.totalorder %s26, 1
      %p275 = por %p273, %p274
      %p276 = scmp.ne.s32.totalorder %s267, %s268
      %p277 = scmp.eq.s32.totalorder %s26, 0
      %p278 = por %p276, %p277
      %p279 = scmp.ne.s32.totalorder %s267, %s268
      %p280 = scmp.eq.s32.totalorder %s27, 1
      %p281 = por %p279, %p280
      %p283 = scmp.ne.s32.totalorder %s268, %s282
      %p284 = scmp.eq.s32.totalorder %s27, 0
      %p285 = por %p283, %p284
      %s286 = ssub.s32 %s21, %s28
      %p287 = scmp.eq.s32.totalorder %s286, 0
      %s289 = sadd.s32 %s288, 1
      %s290 = scalar_select %p287, %s288, %s289
      %p293 = pneg %p287
      %p294 = scmp.eq.s32.totalorder %s21, 1
      %p295 = por %p293, %p294
      %p296 = scmp.ne.s32.totalorder %s288, %s291
      %p297 = scmp.eq.s32.totalorder %s21, 0
      %p298 = por %p296, %p297
      %p299 = scmp.ne.s32.totalorder %s288, %s291
      %p300 = scmp.eq.s32.totalorder %s26, 1
      %p301 = por %p299, %p300
      %p302 = scmp.ne.s32.totalorder %s291, %s292
      %p303 = scmp.eq.s32.totalorder %s26, 0
      %p304 = por %p302, %p303
      %p305 = scmp.ne.s32.totalorder %s291, %s292
      %p306 = scmp.eq.s32.totalorder %s27, 1
      %p307 = por %p305, %p306
      %p309 = scmp.ne.s32.totalorder %s292, %s308
      %p310 = scmp.eq.s32.totalorder %s27, 0
      %p311 = por %p309, %p310
      %p312 = scmp.le.s32.totalorder 1, %s21
      %p313 = scmp.lt.s32.totalorder %s21, 3
      %p314 = pnand %p312, %p313
      %p315 = pneg %p314
      // Predicated region
      $region9: #{_lambda_.1} parent=5 // pred_check
        _
      $region10: #{_lambda_.1} parent=5 // pred_check_branch
        %317 = sbr.rel (%p314) target = $region12
      $region11: #{_lambda_.1} parent=5 // pred_region
        %s318 = ssub.s32 %s21, 1
        // Predicated region
        $region13: #{_lambda_.1} parent=11 // pred_check
          %p319 = pneg %p68
        $region14: #{_lambda_.1} parent=11 // pred_check_branch
          %321 = sbr.rel (%p319) target = $region16
        $region15: #{_lambda_.1} parent=11 // pred_region
          _
        $region16: #{_lambda_.1} parent=11 // pred_fallthru
          _
        // Predicated region
        $region17: #{_lambda_.1} parent=11 // pred_check
          %p322 = pneg %p89
        $region18: #{_lambda_.1} parent=11 // pred_check_branch
          %324 = sbr.rel (%p322) target = $region20
        $region19: #{_lambda_.1} parent=11 // pred_region
          _
        $region20: #{_lambda_.1} parent=11 // pred_fallthru
          _
        // Predicated region
        $region21: #{_lambda_.1} parent=11 // pred_check
          %p325 = pneg %p110
        $region22: #{_lambda_.1} parent=11 // pred_check_branch
          %327 = sbr.rel (%p325) target = $region24
        $region23: #{_lambda_.1} parent=11 // pred_region
          _
        $region24: #{_lambda_.1} parent=11 // pred_fallthru
          _
        // Predicated region
        $region25: #{_lambda_.1} parent=11 // pred_check
          %p328 = pneg %p131
        $region26: #{_lambda_.1} parent=11 // pred_check_branch
          %330 = sbr.rel (%p328) target = $region28
        $region27: #{_lambda_.1} parent=11 // pred_region
          _
        $region28: #{_lambda_.1} parent=11 // pred_fallthru
          _
        // Predicated region
        $region29: #{_lambda_.1} parent=11 // pred_check
          %p331 = pneg %p152
        $region30: #{_lambda_.1} parent=11 // pred_check_branch
          %333 = sbr.rel (%p331) target = $region32
        $region31: #{_lambda_.1} parent=11 // pred_region
          _
        $region32: #{_lambda_.1} parent=11 // pred_fallthru
          _
        // Predicated region
        $region33: #{_lambda_.1} parent=11 // pred_check
          %p334 = pneg %p173
        $region34: #{_lambda_.1} parent=11 // pred_check_branch
          %336 = sbr.rel (%p334) target = $region36
        $region35: #{_lambda_.1} parent=11 // pred_region
          _
        $region36: #{_lambda_.1} parent=11 // pred_fallthru
          _
        // Predicated region
        $region37: #{_lambda_.1} parent=11 // pred_check
          %p337 = pneg %p194
        $region38: #{_lambda_.1} parent=11 // pred_check_branch
          %339 = sbr.rel (%p337) target = $region40
        $region39: #{_lambda_.1} parent=11 // pred_region
          _
        $region40: #{_lambda_.1} parent=11 // pred_fallthru
          _
        // Predicated region
        $region41: #{_lambda_.1} parent=11 // pred_check
          %p340 = pneg %p215
        $region42: #{_lambda_.1} parent=11 // pred_check_branch
          %342 = sbr.rel (%p340) target = $region44
        $region43: #{_lambda_.1} parent=11 // pred_region
          _
        $region44: #{_lambda_.1} parent=11 // pred_fallthru
          _
        // Predicated region
        $region45: #{_lambda_.1} parent=11 // pred_check
          %p343 = pneg %p236
        $region46: #{_lambda_.1} parent=11 // pred_check_branch
          %345 = sbr.rel (%p343) target = $region48
        $region47: #{_lambda_.1} parent=11 // pred_region
          _
        $region48: #{_lambda_.1} parent=11 // pred_fallthru
          _
        // Predicated region
        $region49: #{_lambda_.1} parent=11 // pred_check
          %p346 = pneg %p257
        $region50: #{_lambda_.1} parent=11 // pred_check_branch
          %348 = sbr.rel (%p346) target = $region52
        $region51: #{_lambda_.1} parent=11 // pred_region
          _
        $region52: #{_lambda_.1} parent=11 // pred_fallthru
          _
        // Predicated region
        $region53: #{_lambda_.1} parent=11 // pred_check
          %p349 = pneg %p278
        $region54: #{_lambda_.1} parent=11 // pred_check_branch
          %351 = sbr.rel (%p349) target = $region56
        $region55: #{_lambda_.1} parent=11 // pred_region
          _
        $region56: #{_lambda_.1} parent=11 // pred_fallthru
          _
      $region12: #{_lambda_.1} parent=5 // pred_fallthru
        _
      %p352 = scmp.lt.s32.totalorder %s21, 2
      // Predicated region
      $region57: #{_lambda_.1} parent=5 // pred_check
        %p353 = pneg %p352
      $region58: #{_lambda_.1} parent=5 // pred_check_branch
        %355 = sbr.rel (%p353) target = $region60
      $region59: #{_lambda_.1} parent=5 // pred_region
        // Predicated region
        $region61: #{_lambda_.1} parent=59 // pred_check
          %p356 = pneg %p41
        $region62: #{_lambda_.1} parent=59 // pred_check_branch
          %358 = sbr.rel (%p356) target = $region64
        $region63: #{_lambda_.1} parent=59 // pred_region
          %p359 = scmp.lt.s32.totalorder %s21, 1
          %s360 = scalar_select %p359, %s21, 1
          %s361 = smul.addr %s360, 2
          %s362 = smul.addr %s361, 8
          %s363 = scalar_lea.vmem %s0, %s362
        $region64: #{_lambda_.1} parent=59 // pred_fallthru
          _
      $region60: #{_lambda_.1} parent=5 // pred_fallthru
        _
      %p364 = scmp.le.s32.totalorder 1, %s21
      %p365 = scmp.lt.s32.totalorder %s21, 3
      %p366 = pnand %p364, %p365
      %p367 = pneg %p366
      // Predicated region
      $region65: #{_lambda_.1} parent=5 // pred_check
        _
      $region66: #{_lambda_.1} parent=5 // pred_check_branch
        %369 = sbr.rel (%p366) target = $region68
      $region67: #{_lambda_.1} parent=5 // pred_region
        %s370 = ssub.s32 %s21, 1
        %p371 = scmp.lt.s32.totalorder %s26, 1
        %s372 = scalar_select %p371, %s26, 1
        %s373 = smul.addr %s372, 2
        %s374 = smul.addr %s373, 8
        %s375 = scalar_lea.vmem %s0, %s374
        %p376 = pneg %p47
        %p377 = pneg %p44
        %p378 = pneg %p68
        %p379 = pneg %p65
        %p380 = pneg %p89
        %p381 = pneg %p86
        %p382 = pneg %p110
        %p383 = pneg %p107
        %p384 = pneg %p131
        %p385 = pneg %p128
        %p386 = pneg %p152
        %p387 = pneg %p149
        %p388 = pneg %p173
        %p389 = pneg %p170
        %p390 = pneg %p194
        %p391 = pneg %p191
        %p392 = pneg %p215
        %p393 = pneg %p212
        %p394 = pneg %p236
        %p395 = pneg %p233
        %p396 = pneg %p257
        %p397 = pneg %p254
        %p398 = pneg %p278
        %p399 = pneg %p275
        %p400 = pneg %p304
        %p401 = pneg %p301
        %s402 = sand.u32 %s291, 1
        %s403 = scalar_lea.sflag [#allocation3], %s402
        %s404 = sand.u32 %s291, 1
        %s405 = smul.addr %s404, 16
        %s406 = scalar_lea.vmem [#allocation2], %s405
        %p407 = scmp.lt.s32.totalorder %s26, 1
        %s408 = scalar_select %p407, %s26, 1
        %s409 = smul.addr %s408, 2
        %s410 = smul.addr %s409, 8
        %s411 = scalar_lea.vmem %s0, %s410
        %v413 = vld [vmem:[%s411] sm:$0xff]
        %v414 = vld [vmem:[%s411 + $0x8] sm:$0xff]
        %v415 = vpack.c.bf16 %v414, %v413
        %v416 = vld [vmem:[%s1] sm:$0xff]
        %v417 = vpack.c.bf16 %v416, %v416
        %v418 = vld [vmem:[%s2] sm:$0xf]
        %v419 = vld [vmem:[%s2 + $0x4] sm:$0xf]
        %v420 = vld [vmem:[%s2 + $0x8] sm:$0xf]
        %v421 = vld [vmem:[%s2 + $0xc] sm:$0xf]
        %v422 = vld [vmem:[%s3] sm:$0x1]
        %v424 = vperm.slane %v422, 0
        %v430 = vunpack.c.l.b16 %v418
        %v431 = vunpack.c.l.b16 %v419
        %v432 = vunpack.c.l.b16 %v420
        %v433 = vunpack.c.l.b16 %v421
        %v434 = vpack.c.b16 %v431, %v430
        %v435 = vpack.c.b16 %v433, %v432
        %vm438 = vcmask 261120
        %v440 = vsel %vm438, %v417, 0
        %442 = vmatpush.bf16.msra.mxu0 0
        %443 = vmatpush.bf16.msra.mxu0 0
        %444 = vmatpush.bf16.msra.mxu0 0
        %445 = vmatpush.bf16.msra.mxu0 0
        %446 = vmatpush.bf16.msra.mxu0 0
        %447 = vmatpush.bf16.msra.mxu0 0
        %448 = vmatpush.bf16.msra.mxu0 %v435
        %449 = vmatpush.bf16.msra.mxu0 %v434
        %450 = vmatmul.bf16.gmra.mxu0 %v440
        %v451 = vpop.f32.mrf.mxu0
        %v452 = vadd.f32 %v424, %v451
        %v453 = vpop.f32.mrf.mxu0
        %454 = vdwg.mxu0
        %v455 = vld [vmem:[%s4] sm:$0xf]
        %v456 = vld [vmem:[%s4 + $0x4] sm:$0xf]
        %v457 = vld [vmem:[%s4 + $0x8] sm:$0xf]
        %v458 = vld [vmem:[%s4 + $0xc] sm:$0xf]
        %v459 = vld [vmem:[%s5] sm:$0x1]
        %v461 = vperm.slane %v459, 0
        %v467 = vunpack.c.l.b16 %v455
        %v468 = vunpack.c.l.b16 %v456
        %v469 = vunpack.c.l.b16 %v457
        %v470 = vunpack.c.l.b16 %v458
        %v471 = vpack.c.b16 %v468, %v467
        %v472 = vpack.c.b16 %v470, %v469
        %v476 = vsel %vm438, %v415, 0
        %478 = vmatpush.bf16.msra.mxu0 0
        %479 = vmatpush.bf16.msra.mxu0 0
        %480 = vmatpush.bf16.msra.mxu0 0
        %481 = vmatpush.bf16.msra.mxu0 0
        %482 = vmatpush.bf16.msra.mxu0 0
        %483 = vmatpush.bf16.msra.mxu0 0
        %484 = vmatpush.bf16.msra.mxu0 %v472
        %485 = vmatpush.bf16.msra.mxu0 %v471
        %486 = vmatmul.bf16.gmra.mxu0 %v476
        %v487 = vpop.f32.mrf.mxu0
        %v488 = vadd.f32 %v461, %v487
        %v489 = vpop.f32.mrf.mxu0
        %v490 = vadd.f32 %v461, %v489
        %491 = vdwg.mxu0
        %v492 = vpack.c.bf16 %v452, %v452
        %v493 = vpack.c.bf16 %v488, %v488
        %v494 = vpack.c.bf16 %v490, %v490
        %v495 = vld [vmem:[%s6] sm:$0xf]
        %v496 = vld [vmem:[%s6 + $0x4] sm:$0xf]
        %v497 = vld [vmem:[%s6 + $0x8] sm:$0xf]
        %v498 = vld [vmem:[%s6 + $0xc] sm:$0xf]
        %v499 = vld [vmem:[%s7] sm:$0x1]
        %v502 = vunpack.c.l.b16 %v493
        %v503 = vunpack.c.l.b16 %v494
        %v504 = vpack.c.b16 %v503, %v502
        %vm505 = vcmask 64512
        %v507 = vsel %vm505, %v492, 0
        %v510 = vsel %vm505, %v504, 0
        %512 = vmatpush.bf16.xpose.msra.mxu0 0
        %513 = vmatpush.bf16.xpose.msra.mxu0 0
        %514 = vmatpush.bf16.xpose.msra.mxu0 0
        %515 = vmatpush.bf16.xpose.msra.mxu0 0
        %516 = vmatpush.bf16.xpose.msra.mxu0 0
        %517 = vmatpush.bf16.xpose.msra.mxu0 0
        %518 = vmatpush.bf16.xpose.msra.mxu0 0
        %519 = vmatpush.bf16.xpose.msra.mxu0 %v510
        %520 = vmatmul.bf16.gmra.mxu0 %v507
        %v521 = vpop.f32.mrf.mxu0
        %v522 = vadd.f32 0.0, %v521
        %v523 = vpop.f32.mrf.mxu0
        %524 = vdwg.mxu0
        %vm525 = vcmask 130048
        %v526 = vsel %vm525, %v522, -inf
        %527 = vmax.xlane.f32.xlu0 %v526
        %v528 = vpop.xlane.xlu0 %527
        %v529 = vsub.f32 %v522, %v528
        %v530 = vmul.f32 %v529, 1.442695
        %v531 = vpow.pop %v530
        %v532 = vsel %vm525, %v531, 0.0
        %533 = vadd.xlane.f32.xlu0 %v532
        %v534 = vpop.xlane.xlu0 %533
        %v535 = vrcp.pop %v534
        %v536 = vmul.f32 %v534, %v535
        %v537 = vsub.f32 2.0, %v536
        %v538 = vmul.f32 %v535, %v537
        %v539 = vpack.c.bf16 %v531, %v531
        %540 = vrot.lane.b32.xlu0 %v504, 96
        %v541 = vpop.permute.xlu0 %540
        %v544 = vsel %vm525, %v539, 0
        %546 = vmatpush.bf16.msra.mxu0 0
        %547 = vmatpush.bf16.msra.mxu0 0
        %548 = vmatpush.bf16.msra.mxu0 0
        %549 = vmatpush.bf16.msra.mxu0 0
        %550 = vmatpush.bf16.msra.mxu0 0
        %551 = vmatpush.bf16.msra.mxu0 0
        %552 = vmatpush.bf16.msra.mxu0 0
        %553 = vmatpush.bf16.msra.mxu0 %v541
        %554 = vmatmul.bf16.gmra.mxu0 %v544
        %v555 = vpop.f32.mrf.mxu0
        %v556 = vadd.f32 0.0, %v555
        %v557 = vpop.f32.mrf.mxu0
        %558 = vdwg.mxu0
        %v559 = vmul.f32 %v556, %v538
        %v561 = vunpack.c.l.b16 %v492
        %v562 = vpack.c.b16 %v561, %v561
        %563 = vrot.lane.b32.xlu0 %v562, 120
        %v564 = vpop.permute.xlu0 %563
        %565 = vrot.lane.b32.xlu0 %v504, 120
        %v566 = vpop.permute.xlu0 %565
        %v568 = vsel %vm505, %v564, 0
        %v571 = vsel %vm505, %v566, 0
        %573 = vmatpush.bf16.xpose.msra.mxu0 0
        %574 = vmatpush.bf16.xpose.msra.mxu0 0
        %575 = vmatpush.bf16.xpose.msra.mxu0 0
        %576 = vmatpush.bf16.xpose.msra.mxu0 0
        %577 = vmatpush.bf16.xpose.msra.mxu0 0
        %578 = vmatpush.bf16.xpose.msra.mxu0 0
        %579 = vmatpush.bf16.xpose.msra.mxu0 0
        %580 = vmatpush.bf16.xpose.msra.mxu0 %v571
        %581 = vmatmul.bf16.gmra.mxu0 %v568
        %v582 = vpop.f32.mrf.mxu0
        %v583 = vadd.f32 0.0, %v582
        %v584 = vpop.f32.mrf.mxu0
        %585 = vdwg.mxu0
        %v586 = vsel %vm525, %v583, -inf
        %587 = vmax.xlane.f32.xlu0 %v586
        %v588 = vpop.xlane.xlu0 %587
        %v589 = vsub.f32 %v583, %v588
        %v590 = vmul.f32 %v589, 1.442695
        %v591 = vpow.pop %v590
        %v592 = vsel %vm525, %v591, 0.0
        %593 = vadd.xlane.f32.xlu0 %v592
        %v594 = vpop.xlane.xlu0 %593
        %v595 = vrcp.pop %v594
        %v596 = vmul.f32 %v594, %v595
        %v597 = vsub.f32 2.0, %v596
        %v598 = vmul.f32 %v595, %v597
        %v599 = vpack.c.bf16 %v591, %v591
        %600 = vrot.lane.b32.xlu0 %v504, 88
        %v601 = vpop.permute.xlu0 %600
        %v604 = vsel %vm525, %v599, 0
        %606 = vmatpush.bf16.msra.mxu0 0
        %607 = vmatpush.bf16.msra.mxu0 0
        %608 = vmatpush.bf16.msra.mxu0 0
        %609 = vmatpush.bf16.msra.mxu0 0
        %610 = vmatpush.bf16.msra.mxu0 0
        %611 = vmatpush.bf16.msra.mxu0 0
        %612 = vmatpush.bf16.msra.mxu0 0
        %613 = vmatpush.bf16.msra.mxu0 %v601
        %614 = vmatmul.bf16.gmra.mxu0 %v604
        %v615 = vpop.f32.mrf.mxu0
        %v616 = vadd.f32 0.0, %v615
        %v617 = vpop.f32.mrf.mxu0
        %618 = vdwg.mxu0
        %v619 = vmul.f32 %v616, %v598
        %620 = vrot.lane.b32.xlu0 %v562, 112
        %v621 = vpop.permute.xlu0 %620
        %622 = vrot.lane.b32.xlu0 %v504, 112
        %v623 = vpop.permute.xlu0 %622
        %v625 = vsel %vm505, %v621, 0
        %v628 = vsel %vm505, %v623, 0
        %630 = vmatpush.bf16.xpose.msra.mxu0 0
        %631 = vmatpush.bf16.xpose.msra.mxu0 0
        %632 = vmatpush.bf16.xpose.msra.mxu0 0
        %633 = vmatpush.bf16.xpose.msra.mxu0 0
        %634 = vmatpush.bf16.xpose.msra.mxu0 0
        %635 = vmatpush.bf16.xpose.msra.mxu0 0
        %636 = vmatpush.bf16.xpose.msra.mxu0 0
        %637 = vmatpush.bf16.xpose.msra.mxu0 %v628
        %638 = vmatmul.bf16.gmra.mxu0 %v625
        %v639 = vpop.f32.mrf.mxu0
        %v640 = vadd.f32 0.0, %v639
        %v641 = vpop.f32.mrf.mxu0
        %642 = vdwg.mxu0
        %v643 = vsel %vm525, %v640, -inf
        %644 = vmax.xlane.f32.xlu0 %v643
        %v645 = vpop.xlane.xlu0 %644
        %v646 = vsub.f32 %v640, %v645
        %v647 = vmul.f32 %v646, 1.442695
        %v648 = vpow.pop %v647
        %v649 = vsel %vm525, %v648, 0.0
        %650 = vadd.xlane.f32.xlu0 %v649
        %v651 = vpop.xlane.xlu0 %650
        %v652 = vrcp.pop %v651
        %v653 = vmul.f32 %v651, %v652
        %v654 = vsub.f32 2.0, %v653
        %v655 = vmul.f32 %v652, %v654
        %v656 = vpack.c.bf16 %v648, %v648
        %657 = vrot.lane.b32.xlu0 %v504, 80
        %v658 = vpop.permute.xlu0 %657
        %v661 = vsel %vm525, %v656, 0
        %663 = vmatpush.bf16.msra.mxu0 0
        %664 = vmatpush.bf16.msra.mxu0 0
        %665 = vmatpush.bf16.msra.mxu0 0
        %666 = vmatpush.bf16.msra.mxu0 0
        %667 = vmatpush.bf16.msra.mxu0 0
        %668 = vmatpush.bf16.msra.mxu0 0
        %669 = vmatpush.bf16.msra.mxu0 0
        %670 = vmatpush.bf16.msra.mxu0 %v658
        %671 = vmatmul.bf16.gmra.mxu0 %v661
        %v672 = vpop.f32.mrf.mxu0
        %v673 = vadd.f32 0.0, %v672
        %v674 = vpop.f32.mrf.mxu0
        %675 = vdwg.mxu0
        %v676 = vmul.f32 %v673, %v655
        %677 = vrot.lane.b32.xlu0 %v562, 104
        %v678 = vpop.permute.xlu0 %677
        %679 = vrot.lane.b32.xlu0 %v504, 104
        %v680 = vpop.permute.xlu0 %679
        %v682 = vsel %vm505, %v678, 0
        %v685 = vsel %vm505, %v680, 0
        %687 = vmatpush.bf16.xpose.msra.mxu0 0
        %688 = vmatpush.bf16.xpose.msra.mxu0 0
        %689 = vmatpush.bf16.xpose.msra.mxu0 0
        %690 = vmatpush.bf16.xpose.msra.mxu0 0
        %691 = vmatpush.bf16.xpose.msra.mxu0 0
        %692 = vmatpush.bf16.xpose.msra.mxu0 0
        %693 = vmatpush.bf16.xpose.msra.mxu0 0
        %694 = vmatpush.bf16.xpose.msra.mxu0 %v685
        %695 = vmatmul.bf16.gmra.mxu0 %v682
        %v696 = vpop.f32.mrf.mxu0
        %v697 = vadd.f32 0.0, %v696
        %v698 = vpop.f32.mrf.mxu0
        %699 = vdwg.mxu0
        %v700 = vsel %vm525, %v697, -inf
        %701 = vmax.xlane.f32.xlu0 %v700
        %v702 = vpop.xlane.xlu0 %701
        %v703 = vsub.f32 %v697, %v702
        %v704 = vmul.f32 %v703, 1.442695
        %v705 = vpow.pop %v704
        %v706 = vsel %vm525, %v705, 0.0
        %707 = vadd.xlane.f32.xlu0 %v706
        %v708 = vpop.xlane.xlu0 %707
        %v709 = vrcp.pop %v708
        %v710 = vmul.f32 %v708, %v709
        %v711 = vsub.f32 2.0, %v710
        %v712 = vmul.f32 %v709, %v711
        %v713 = vpack.c.bf16 %v705, %v705
        %714 = vrot.lane.b32.xlu0 %v504, 72
        %v715 = vpop.permute.xlu0 %714
        %v718 = vsel %vm525, %v713, 0
        %720 = vmatpush.bf16.msra.mxu0 0
        %721 = vmatpush.bf16.msra.mxu0 0
        %722 = vmatpush.bf16.msra.mxu0 0
        %723 = vmatpush.bf16.msra.mxu0 0
        %724 = vmatpush.bf16.msra.mxu0 0
        %725 = vmatpush.bf16.msra.mxu0 0
        %726 = vmatpush.bf16.msra.mxu0 0
        %727 = vmatpush.bf16.msra.mxu0 %v715
        %728 = vmatmul.bf16.gmra.mxu0 %v718
        %v729 = vpop.f32.mrf.mxu0
        %v730 = vadd.f32 0.0, %v729
        %v731 = vpop.f32.mrf.mxu0
        %732 = vdwg.mxu0
        %v733 = vmul.f32 %v730, %v712
        %735 = vrot.lane.b32.xlu0 %v619, 8
        %v736 = vpop.permute.xlu0 %735
        %739 = vrot.lane.b32.xlu0 %v676, 16
        %v740 = vpop.permute.xlu0 %739
        %743 = vrot.lane.b32.xlu0 %v733, 24
        %v744 = vpop.permute.xlu0 %743
        %v746 = vsel %vm505, %v559, %v736
        %v747 = vsel %vm525, %v746, %v740
        %vm748 = vcmask 195584
        %v749 = vsel %vm748, %v747, %v744
        %v750 = vadd.f32 %v452, %v749
        %v751 = vpack.c.bf16 %v750, %v750
        %v753 = vperm.slane %v499, 0
        %v759 = vunpack.c.l.b16 %v495
        %v760 = vunpack.c.l.b16 %v496
        %v761 = vunpack.c.l.b16 %v497
        %v762 = vunpack.c.l.b16 %v498
        %v763 = vpack.c.b16 %v760, %v759
        %v764 = vpack.c.b16 %v762, %v761
        %v768 = vsel %vm438, %v751, 0
        %770 = vmatpush.bf16.msra.mxu0 0
        %771 = vmatpush.bf16.msra.mxu0 0
        %772 = vmatpush.bf16.msra.mxu0 0
        %773 = vmatpush.bf16.msra.mxu0 0
        %774 = vmatpush.bf16.msra.mxu0 0
        %775 = vmatpush.bf16.msra.mxu0 0
        %776 = vmatpush.bf16.msra.mxu0 %v764
        %777 = vmatpush.bf16.msra.mxu0 %v763
        %778 = vmatmul.bf16.gmra.mxu0 %v768
        %v779 = vpop.f32.mrf.mxu0
        %v780 = vadd.f32 %v753, %v779
        %v781 = vpop.f32.mrf.mxu0
        %782 = vdwg.mxu0
        %v783 = vmax.f32 %v780, 0.0
        %v784 = vadd.f32 %v750, %v783
        %v785 = vpack.c.bf16 %v784, %v784
        %v786 = vld [vmem:[%s8] sm:$0xf]
        %v787 = vld [vmem:[%s8 + $0x4] sm:$0xf]
        %v788 = vld [vmem:[%s8 + $0x8] sm:$0xf]
        %v789 = vld [vmem:[%s8 + $0xc] sm:$0xf]
        %v790 = vld [vmem:[%s9] sm:$0x1]
        %v792 = vperm.slane %v790, 0
        %v798 = vunpack.c.l.b16 %v786
        %v799 = vunpack.c.l.b16 %v787
        %v800 = vunpack.c.l.b16 %v788
        %v801 = vunpack.c.l.b16 %v789
        %v802 = vpack.c.b16 %v799, %v798
        %v803 = vpack.c.b16 %v801, %v800
        %v807 = vsel %vm438, %v785, 0
        %809 = vmatpush.bf16.msra.mxu0 0
        %810 = vmatpush.bf16.msra.mxu0 0
        %811 = vmatpush.bf16.msra.mxu0 0
        %812 = vmatpush.bf16.msra.mxu0 0
        %813 = vmatpush.bf16.msra.mxu0 0
        %814 = vmatpush.bf16.msra.mxu0 0
        %815 = vmatpush.bf16.msra.mxu0 %v803
        %816 = vmatpush.bf16.msra.mxu0 %v802
        %817 = vmatmul.bf16.gmra.mxu0 %v807
        %v818 = vpop.f32.mrf.mxu0
        %v819 = vadd.f32 %v792, %v818
        %v820 = vpop.f32.mrf.mxu0
        %821 = vdwg.mxu0
        %v822 = vpack.c.bf16 %v819, %v819
        %v823 = vld [vmem:[%s10] sm:$0xf]
        %v824 = vld [vmem:[%s10 + $0x4] sm:$0xf]
        %v825 = vld [vmem:[%s10 + $0x8] sm:$0xf]
        %v826 = vld [vmem:[%s10 + $0xc] sm:$0xf]
        %v827 = vld [vmem:[%s11] sm:$0x1]
        %828 = vrot.lane.b32.xlu0 %v504, 64
        %v829 = vpop.permute.xlu0 %828
        %v831 = vsel %vm505, %v829, 0
        %v834 = vsel %vm505, %v822, 0
        %836 = vmatpush.bf16.xpose.msra.mxu0 0
        %837 = vmatpush.bf16.xpose.msra.mxu0 0
        %838 = vmatpush.bf16.xpose.msra.mxu0 0
        %839 = vmatpush.bf16.xpose.msra.mxu0 0
        %840 = vmatpush.bf16.xpose.msra.mxu0 0
        %841 = vmatpush.bf16.xpose.msra.mxu0 0
        %842 = vmatpush.bf16.xpose.msra.mxu0 0
        %843 = vmatpush.bf16.xpose.msra.mxu0 %v834
        %844 = vmatmul.bf16.gmra.mxu0 %v831
        %v845 = vpop.f32.mrf.mxu0
        %v846 = vadd.f32 0.0, %v845
        %v847 = vpop.f32.mrf.mxu0
        %v848 = vadd.f32 0.0, %v847
        %849 = vdwg.mxu0
        %v850 = vsel %vm505, %v846, -inf
        %851 = vmax.xlane.f32.xlu0 %v850
        %v852 = vpop.xlane.xlu0 %851
        %v853 = vsel %vm505, %v848, -inf
        %854 = vmax.xlane.f32.xlu0 %v853
        %v855 = vpop.xlane.xlu0 %854
        %v856 = vsub.f32 %v846, %v852
        %v857 = vsub.f32 %v848, %v855
        %v858 = vmul.f32 %v856, 1.442695
        %v859 = vpow.pop %v858
        %v860 = vmul.f32 %v857, 1.442695
        %v861 = vpow.pop %v860
        %v862 = vsel %vm505, %v859, 0.0
        %863 = vadd.xlane.f32.xlu0 %v862
        %v864 = vpop.xlane.xlu0 %863
        %v865 = vsel %vm505, %v861, 0.0
        %866 = vadd.xlane.f32.xlu0 %v865
        %v867 = vpop.xlane.xlu0 %866
        %v868 = vrcp.pop %v864
        %v869 = vrcp.pop %v867
        %v870 = vmul.f32 %v864, %v868
        %v871 = vmul.f32 %v867, %v869
        %v872 = vsub.f32 2.0, %v870
        %v873 = vsub.f32 2.0, %v871
        %v874 = vmul.f32 %v868, %v872
        %v875 = vmul.f32 %v869, %v873
        %v876 = vpack.c.bf16 %v859, %v859
        %v877 = vpack.c.bf16 %v861, %v861
        %v880 = vunpack.c.l.b16 %v876
        %v881 = vunpack.c.l.b16 %v877
        %v882 = vpack.c.b16 %v881, %v880
        %v884 = vunpack.c.l.b16 %v822
        %v885 = vpack.c.b16 %v884, %v884
        %886 = vrot.lane.b32.xlu0 %v885, 96
        %v887 = vpop.permute.xlu0 %886
        %v889 = vsel %vm505, %v882, 0
        %vm891 = vcmask 1043456
        %v893 = vsel %vm891, %v887, 0
        %895 = vmatpush.bf16.msra.mxu0 0
        %896 = vmatpush.bf16.msra.mxu0 0
        %897 = vmatpush.bf16.msra.mxu0 0
        %898 = vmatpush.bf16.msra.mxu0 0
        %899 = vmatpush.bf16.msra.mxu0 0
        %900 = vmatpush.bf16.msra.mxu0 0
        %901 = vmatpush.bf16.msra.mxu0 0
        %902 = vmatpush.bf16.msra.mxu0 %v893
        %903 = vmatmul.bf16.gmra.mxu0 %v889
        %v904 = vpop.f32.mrf.mxu0
        %v905 = vadd.f32 0.0, %v904
        %v906 = vpop.f32.mrf.mxu0
        %v907 = vadd.f32 0.0, %v906
        %908 = vdwg.mxu0
        %v909 = vmul.f32 %v905, %v874
        %v910 = vmul.f32 %v907, %v875
        %911 = vrot.lane.b32.xlu0 %v504, 56
        %v912 = vpop.permute.xlu0 %911
        %913 = vrot.lane.b32.xlu0 %v885, 120
        %v914 = vpop.permute.xlu0 %913
        %v916 = vsel %vm505, %v912, 0
        %v919 = vsel %vm505, %v914, 0
        %921 = vmatpush.bf16.xpose.msra.mxu0 0
        %922 = vmatpush.bf16.xpose.msra.mxu0 0
        %923 = vmatpush.bf16.xpose.msra.mxu0 0
        %924 = vmatpush.bf16.xpose.msra.mxu0 0
        %925 = vmatpush.bf16.xpose.msra.mxu0 0
        %926 = vmatpush.bf16.xpose.msra.mxu0 0
        %927 = vmatpush.bf16.xpose.msra.mxu0 0
        %928 = vmatpush.bf16.xpose.msra.mxu0 %v919
        %929 = vmatmul.bf16.gmra.mxu0 %v916
        %v930 = vpop.f32.mrf.mxu0
        %v931 = vadd.f32 0.0, %v930
        %v932 = vpop.f32.mrf.mxu0
        %v933 = vadd.f32 0.0, %v932
        %934 = vdwg.mxu0
        %v935 = vsel %vm505, %v931, -inf
        %936 = vmax.xlane.f32.xlu0 %v935
        %v937 = vpop.xlane.xlu0 %936
        %v938 = vsel %vm505, %v933, -inf
        %939 = vmax.xlane.f32.xlu0 %v938
        %v940 = vpop.xlane.xlu0 %939
        %v941 = vsub.f32 %v931, %v937
        %v942 = vsub.f32 %v933, %v940
        %v943 = vmul.f32 %v941, 1.442695
        %v944 = vpow.pop %v943
        %v945 = vmul.f32 %v942, 1.442695
        %v946 = vpow.pop %v945
        %v947 = vsel %vm505, %v944, 0.0
        %948 = vadd.xlane.f32.xlu0 %v947
        %v949 = vpop.xlane.xlu0 %948
        %v950 = vsel %vm505, %v946, 0.0
        %951 = vadd.xlane.f32.xlu0 %v950
        %v952 = vpop.xlane.xlu0 %951
        %v953 = vrcp.pop %v949
        %v954 = vrcp.pop %v952
        %v955 = vmul.f32 %v949, %v953
        %v956 = vmul.f32 %v952, %v954
        %v957 = vsub.f32 2.0, %v955
        %v958 = vsub.f32 2.0, %v956
        %v959 = vmul.f32 %v953, %v957
        %v960 = vmul.f32 %v954, %v958
        %v961 = vpack.c.bf16 %v944, %v944
        %v962 = vpack.c.bf16 %v946, %v946
        %v965 = vunpack.c.l.b16 %v961
        %v966 = vunpack.c.l.b16 %v962
        %v967 = vpack.c.b16 %v966, %v965
        %968 = vrot.lane.b32.xlu0 %v885, 88
        %v969 = vpop.permute.xlu0 %968
        %v971 = vsel %vm505, %v967, 0
        %v974 = vsel %vm891, %v969, 0
        %976 = vmatpush.bf16.msra.mxu0 0
        %977 = vmatpush.bf16.msra.mxu0 0
        %978 = vmatpush.bf16.msra.mxu0 0
        %979 = vmatpush.bf16.msra.mxu0 0
        %980 = vmatpush.bf16.msra.mxu0 0
        %981 = vmatpush.bf16.msra.mxu0 0
        %982 = vmatpush.bf16.msra.mxu0 0
        %983 = vmatpush.bf16.msra.mxu0 %v974
        %984 = vmatmul.bf16.gmra.mxu0 %v971
        %v985 = vpop.f32.mrf.mxu0
        %v986 = vadd.f32 0.0, %v985
        %v987 = vpop.f32.mrf.mxu0
        %v988 = vadd.f32 0.0, %v987
        %989 = vdwg.mxu0
        %v990 = vmul.f32 %v986, %v959
        %v991 = vmul.f32 %v988, %v960
        %992 = vrot.lane.b32.xlu0 %v504, 48
        %v993 = vpop.permute.xlu0 %992
        %994 = vrot.lane.b32.xlu0 %v885, 112
        %v995 = vpop.permute.xlu0 %994
        %v997 = vsel %vm505, %v993, 0
        %v1000 = vsel %vm505, %v995, 0
        %1002 = vmatpush.bf16.xpose.msra.mxu0 0
        %1003 = vmatpush.bf16.xpose.msra.mxu0 0
        %1004 = vmatpush.bf16.xpose.msra.mxu0 0
        %1005 = vmatpush.bf16.xpose.msra.mxu0 0
        %1006 = vmatpush.bf16.xpose.msra.mxu0 0
        %1007 = vmatpush.bf16.xpose.msra.mxu0 0
        %1008 = vmatpush.bf16.xpose.msra.mxu0 0
        %1009 = vmatpush.bf16.xpose.msra.mxu0 %v1000
        %1010 = vmatmul.bf16.gmra.mxu0 %v997
        %v1011 = vpop.f32.mrf.mxu0
        %v1012 = vadd.f32 0.0, %v1011
        %v1013 = vpop.f32.mrf.mxu0
        %v1014 = vadd.f32 0.0, %v1013
        %1015 = vdwg.mxu0
        %v1016 = vsel %vm505, %v1012, -inf
        %1017 = vmax.xlane.f32.xlu0 %v1016
        %v1018 = vpop.xlane.xlu0 %1017
        %v1019 = vsel %vm505, %v1014, -inf
        %1020 = vmax.xlane.f32.xlu0 %v1019
        %v1021 = vpop.xlane.xlu0 %1020
        %v1022 = vsub.f32 %v1012, %v1018
        %v1023 = vsub.f32 %v1014, %v1021
        %v1024 = vmul.f32 %v1022, 1.442695
        %v1025 = vpow.pop %v1024
        %v1026 = vmul.f32 %v1023, 1.442695
        %v1027 = vpow.pop %v1026
        %v1028 = vsel %vm505, %v1025, 0.0
        %1029 = vadd.xlane.f32.xlu0 %v1028
        %v1030 = vpop.xlane.xlu0 %1029
        %v1031 = vsel %vm505, %v1027, 0.0
        %1032 = vadd.xlane.f32.xlu0 %v1031
        %v1033 = vpop.xlane.xlu0 %1032
        %v1034 = vrcp.pop %v1030
        %v1035 = vrcp.pop %v1033
        %v1036 = vmul.f32 %v1030, %v1034
        %v1037 = vmul.f32 %v1033, %v1035
        %v1038 = vsub.f32 2.0, %v1036
        %v1039 = vsub.f32 2.0, %v1037
        %v1040 = vmul.f32 %v1034, %v1038
        %v1041 = vmul.f32 %v1035, %v1039
        %v1042 = vpack.c.bf16 %v1025, %v1025
        %v1043 = vpack.c.bf16 %v1027, %v1027
        %v1046 = vunpack.c.l.b16 %v1042
        %v1047 = vunpack.c.l.b16 %v1043
        %v1048 = vpack.c.b16 %v1047, %v1046
        %1049 = vrot.lane.b32.xlu0 %v885, 80
        %v1050 = vpop.permute.xlu0 %1049
        %v1052 = vsel %vm505, %v1048, 0
        %v1055 = vsel %vm891, %v1050, 0
        %1057 = vmatpush.bf16.msra.mxu0 0
        %1058 = vmatpush.bf16.msra.mxu0 0
        %1059 = vmatpush.bf16.msra.mxu0 0
        %1060 = vmatpush.bf16.msra.mxu0 0
        %1061 = vmatpush.bf16.msra.mxu0 0
        %1062 = vmatpush.bf16.msra.mxu0 0
        %1063 = vmatpush.bf16.msra.mxu0 0
        %1064 = vmatpush.bf16.msra.mxu0 %v1055
        %1065 = vmatmul.bf16.gmra.mxu0 %v1052
        %v1066 = vpop.f32.mrf.mxu0
        %v1067 = vadd.f32 0.0, %v1066
        %v1068 = vpop.f32.mrf.mxu0
        %v1069 = vadd.f32 0.0, %v1068
        %1070 = vdwg.mxu0
        %v1071 = vmul.f32 %v1067, %v1040
        %v1072 = vmul.f32 %v1069, %v1041
        %1073 = vrot.lane.b32.xlu0 %v504, 40
        %v1074 = vpop.permute.xlu0 %1073
        %1075 = vrot.lane.b32.xlu0 %v885, 104
        %v1076 = vpop.permute.xlu0 %1075
        %v1078 = vsel %vm505, %v1074, 0
        %v1081 = vsel %vm505, %v1076, 0
        %1083 = vmatpush.bf16.xpose.msra.mxu0 0
        %1084 = vmatpush.bf16.xpose.msra.mxu0 0
        %1085 = vmatpush.bf16.xpose.msra.mxu0 0
        %1086 = vmatpush.bf16.xpose.msra.mxu0 0
        %1087 = vmatpush.bf16.xpose.msra.mxu0 0
        %1088 = vmatpush.bf16.xpose.msra.mxu0 0
        %1089 = vmatpush.bf16.xpose.msra.mxu0 0
        %1090 = vmatpush.bf16.xpose.msra.mxu0 %v1081
        %1091 = vmatmul.bf16.gmra.mxu0 %v1078
        %v1092 = vpop.f32.mrf.mxu0
        %v1093 = vadd.f32 0.0, %v1092
        %v1094 = vpop.f32.mrf.mxu0
        %v1095 = vadd.f32 0.0, %v1094
        %1096 = vdwg.mxu0
        %v1097 = vsel %vm505, %v1093, -inf
        %1098 = vmax.xlane.f32.xlu0 %v1097
        %v1099 = vpop.xlane.xlu0 %1098
        %v1100 = vsel %vm505, %v1095, -inf
        %1101 = vmax.xlane.f32.xlu0 %v1100
        %v1102 = vpop.xlane.xlu0 %1101
        %v1103 = vsub.f32 %v1093, %v1099
        %v1104 = vsub.f32 %v1095, %v1102
        %v1105 = vmul.f32 %v1103, 1.442695
        %v1106 = vpow.pop %v1105
        %v1107 = vmul.f32 %v1104, 1.442695
        %v1108 = vpow.pop %v1107
        %v1109 = vsel %vm505, %v1106, 0.0
        %1110 = vadd.xlane.f32.xlu0 %v1109
        %v1111 = vpop.xlane.xlu0 %1110
        %v1112 = vsel %vm505, %v1108, 0.0
        %1113 = vadd.xlane.f32.xlu0 %v1112
        %v1114 = vpop.xlane.xlu0 %1113
        %v1115 = vrcp.pop %v1111
        %v1116 = vrcp.pop %v1114
        %v1117 = vmul.f32 %v1111, %v1115
        %v1118 = vmul.f32 %v1114, %v1116
        %v1119 = vsub.f32 2.0, %v1117
        %v1120 = vsub.f32 2.0, %v1118
        %v1121 = vmul.f32 %v1115, %v1119
        %v1122 = vmul.f32 %v1116, %v1120
        %v1123 = vpack.c.bf16 %v1106, %v1106
        %v1124 = vpack.c.bf16 %v1108, %v1108
        %v1127 = vunpack.c.l.b16 %v1123
        %v1128 = vunpack.c.l.b16 %v1124
        %v1129 = vpack.c.b16 %v1128, %v1127
        %1130 = vrot.lane.b32.xlu0 %v885, 72
        %v1131 = vpop.permute.xlu0 %1130
        %v1133 = vsel %vm505, %v1129, 0
        %v1136 = vsel %vm891, %v1131, 0
        %1138 = vmatpush.bf16.msra.mxu0 0
        %1139 = vmatpush.bf16.msra.mxu0 0
        %1140 = vmatpush.bf16.msra.mxu0 0
        %1141 = vmatpush.bf16.msra.mxu0 0
        %1142 = vmatpush.bf16.msra.mxu0 0
        %1143 = vmatpush.bf16.msra.mxu0 0
        %1144 = vmatpush.bf16.msra.mxu0 0
        %1145 = vmatpush.bf16.msra.mxu0 %v1136
        %1146 = vmatmul.bf16.gmra.mxu0 %v1133
        %v1147 = vpop.f32.mrf.mxu0
        %v1148 = vadd.f32 0.0, %v1147
        %v1149 = vpop.f32.mrf.mxu0
        %v1150 = vadd.f32 0.0, %v1149
        %1151 = vdwg.mxu0
        %v1152 = vmul.f32 %v1148, %v1121
        %v1153 = vmul.f32 %v1150, %v1122
        %1156 = vrot.lane.b32.xlu0 %v990, 8
        %v1157 = vpop.permute.xlu0 %1156
        %1158 = vrot.lane.b32.xlu0 %v991, 8
        %v1159 = vpop.permute.xlu0 %1158
        %1164 = vrot.lane.b32.xlu0 %v1071, 16
        %v1165 = vpop.permute.xlu0 %1164
        %1166 = vrot.lane.b32.xlu0 %v1072, 16
        %v1167 = vpop.permute.xlu0 %1166
        %1172 = vrot.lane.b32.xlu0 %v1152, 24
        %v1173 = vpop.permute.xlu0 %1172
        %1174 = vrot.lane.b32.xlu0 %v1153, 24
        %v1175 = vpop.permute.xlu0 %1174
        %v1178 = vsel %vm505, %v909, %v1157
        %v1179 = vsel %vm505, %v910, %v1159
        %v1180 = vsel %vm525, %v1178, %v1165
        %v1181 = vsel %vm525, %v1179, %v1167
        %v1182 = vsel %vm748, %v1180, %v1173
        %v1183 = vsel %vm748, %v1181, %v1175
        %1186 = vrot.lane.b32.xlu0 %v1182, 64
        %v1187 = vpop.permute.xlu0 %1186
        %1188 = vrot.lane.b32.xlu0 %v1183, 64
        %v1189 = vpop.permute.xlu0 %1188
        %v1192 = vadd.f32 %v488, %v1187
        %v1193 = vadd.f32 %v490, %v1189
        %v1194 = vpack.c.bf16 %v1193, %v1192
        %v1196 = vperm.slane %v827, 0
        %1199 = vrot.lane.b32.xlu0 %v1194, 64
        %v1200 = vpop.permute.xlu0 %1199
        %v1205 = vunpack.c.l.b16 %v823
        %v1206 = vunpack.c.l.b16 %v824
        %v1207 = vunpack.c.l.b16 %v825
        %v1208 = vunpack.c.l.b16 %v826
        %v1209 = vpack.c.b16 %v1206, %v1205
        %v1210 = vpack.c.b16 %v1208, %v1207
        %v1214 = vsel %vm438, %v1200, 0
        %1216 = vmatpush.bf16.msra.mxu0 0
        %1217 = vmatpush.bf16.msra.mxu0 0
        %1218 = vmatpush.bf16.msra.mxu0 0
        %1219 = vmatpush.bf16.msra.mxu0 0
        %1220 = vmatpush.bf16.msra.mxu0 0
        %1221 = vmatpush.bf16.msra.mxu0 0
        %1222 = vmatpush.bf16.msra.mxu0 %v1210
        %1223 = vmatpush.bf16.msra.mxu0 %v1209
        %1224 = vmatmul.bf16.gmra.mxu0 %v1214
        %v1225 = vpop.f32.mrf.mxu0
        %v1226 = vadd.f32 %v1196, %v1225
        %v1227 = vpop.f32.mrf.mxu0
        %v1228 = vadd.f32 %v1196, %v1227
        %1229 = vdwg.mxu0
        %v1230 = vmax.f32 %v1226, 0.0
        %v1231 = vmax.f32 %v1228, 0.0
        %1234 = vrot.lane.b32.xlu0 %v1230, 64
        %v1235 = vpop.permute.xlu0 %1234
        %1236 = vrot.lane.b32.xlu0 %v1231, 64
        %v1237 = vpop.permute.xlu0 %1236
        %v1240 = vadd.f32 %v1192, %v1235
        %v1241 = vadd.f32 %v1193, %v1237
        %1244 = vrot.lane.b32.xlu0 %v1240, 64
        %v1245 = vpop.permute.xlu0 %1244
        %1246 = vrot.lane.b32.xlu0 %v1241, 64
        %v1247 = vpop.permute.xlu0 %1246
        %1250 = vst.msk [vmem:[%s406] sm:$0xff] %vm438, %v1245
        %1251 = vst.msk [vmem:[%s406 + $0x8] sm:$0xff] %vm438, %v1247
        %s1252 = sand.u32 %s291, 1
        %s1253 = scalar_lea.sflag [#allocation3], %s1252
        %s1254 = sand.u32 %s291, 1
        %s1255 = smul.addr %s1254, 16
        %s1256 = scalar_lea.vmem [#allocation2], %s1255
        // Predicated region
        $region69: #{_lambda_.1} parent=67 // pred_check
          %p1257 = pneg %p301
        $region70: #{_lambda_.1} parent=67 // pred_check_branch
          %1259 = sbr.rel (%p1257) target = $region72
        $region71: #{_lambda_.1} parent=67 // pred_region
          %1261 = vsyncadd %s1253, 0
          %s1262 = smul.addr %s26, 2
          %s1263 = smul.addr %s1262, 8
          %s1264 = scalar_lea.hbm %s12, %s1263
          %s1265 = sshll.u32 %s1256, 4
          %s1266 = int_to_ptr.vmem [resolvable:$true] %s1265
          %s1267 = sshll.u32 %s1264, 4
          %s1268 = int_to_ptr.hbm [resolvable:$true] %s1267
          %1273 = dma.vmem_to_hbm [thread:$0]  %s1266, 256, %s1268, %s1253, 128, 128, 8
        $region72: #{_lambda_.1} parent=67 // pred_fallthru
          _
      $region68: #{_lambda_.1} parent=5 // pred_fallthru
        _
      %p1274 = scmp.le.s32.totalorder 2, %s21
      // Predicated region
      $region73: #{_lambda_.1} parent=5 // pred_check
        %p1275 = pneg %p1274
      $region74: #{_lambda_.1} parent=5 // pred_check_branch
        %1277 = sbr.rel (%p1275) target = $region76
      $region75: #{_lambda_.1} parent=5 // pred_region
        %s1278 = ssub.s32 %s21, 2
        // Predicated region
        $region77: #{_lambda_.1} parent=75 // pred_check
          %p1279 = pneg %p307
        $region78: #{_lambda_.1} parent=75 // pred_check_branch
          %1281 = sbr.rel (%p1279) target = $region80
        $region79: #{_lambda_.1} parent=75 // pred_region
          %s1282 = sand.u32 %s292, 1
          %s1283 = scalar_lea.sflag [#allocation3], %s1282
          %s1284 = sand.u32 %s292, 1
          %s1285 = smul.addr %s1284, 16
          %s1286 = scalar_lea.vmem [#allocation2], %s1285
          %1288 = dma.done %s1283, 256
        $region80: #{_lambda_.1} parent=75 // pred_fallthru
          _
      $region76: #{_lambda_.1} parent=5 // pred_fallthru
        _
    $region6: #{_lambda_.1} parent=1 // loop_footer
      %s25 = sadd.s32 1, %s21
    $region7: #{_lambda_.1} parent=1 // loop_footer_branch
      %20 = sbr.rel target = $region3
    $region8: #{_lambda_.1} parent=1 // loop_exit
      _
    %1289 = vsyncpa [#allocation3], 1
    %s1290 = scalar_lea.sflag [#allocation3], 1
    %1291 = vsyncpa %s1290, 1

</llo_original>
